<compile_context>
chip_gen: v7x
topology: tpu7x:2x2x1
jax: 0.10.0
libtpu: 0.0.40
codegen_flags: <defaults>
</compile_context>

<pallas_src>
import jax
import jax.numpy as jnp
from jax.experimental import pallas as pl
from jax.experimental.pallas import tpu as pltpu


def _lstm_kernel(x_ref,        # (S*Bp, D_in) time-major, batch-padded input (f32)
                 wt2v_ref,     # (D_in, 16)   [sin-branch w | linear-branch w0]
                 bt2v_ref,     # (1, 16)
                 wfus_ref,     # (16, 4H)     layer0 folded into W_ih
                 bfus_ref,     # (1, 4H)      l0_b @ W_ih.T + b_ih + b_hh
                 whh_ref,      # (H, 4H)      bf16 (cast once at fuse time)
                 w1_ref,       # (H, out)
                 b1_ref,       # (1, out)
                 out_ref,      # (Bp, out)
                 gx_sc):       # VMEM scratch (S*Bp, 4H): precomputed input gates
    Bp = out_ref.shape[0]
    H = whh_ref.shape[0]
    S = x_ref.shape[0] // Bp
    n_sin = wt2v_ref.shape[1] - 1   # 15 sin-branch lanes of Time2Vec

    # ---- input-side projection, hoisted out of the recurrence ----------------
    # Time2Vec == cat([sin(x @ w + b), x @ w0 + b0], -1) with a fused weight.
    v16 = (jnp.dot(x_ref[...], wt2v_ref[...],
                   preferred_element_type=jnp.float32) + bt2v_ref[...])
    lane16 = jax.lax.broadcasted_iota(jnp.int32, v16.shape, 1)
    v16 = jnp.where(lane16 < n_sin, jnp.sin(v16), v16)
    # layer0 + W_ih (algebraically fused): input gates for every (t, b) row at once.
    gx_sc[...] = (jnp.dot(v16, wfus_ref[...],
                          preferred_element_type=jnp.float32) + bfus_ref[...])

    # ---- serial LSTM recurrence (PyTorch gate order i, f, g, o) --------------
    whh = whh_ref[...]                      # bf16, loaded once, MXU-native

    # Per-lane gate scaling so ONE full-width tanh covers all four gates:
    #   sigmoid(x) == 0.5*tanh(0.5*x) + 0.5  -> scale i/f/o lanes by 0.5,
    #   g (tanh) lanes by 1.0.  Hoisted out of the loop (no per-iter broadcast).
    lane4h = jax.lax.broadcasted_iota(jnp.int32, (1, 4 * H), 1)
    gate_scale = jnp.where((lane4h >= 2 * H) & (lane4h < 3 * H),
                           1.0, 0.5).astype(jnp.float32)

    def step(t, carry):
        h, c = carry
        start = pl.multiple_of(t * Bp, Bp)          # sublane-aligned dynamic read
        gx = gx_sc[pl.ds(start, Bp), :]             # (Bp, 4H)
        gates = gx + jnp.dot(h.astype(jnp.bfloat16), whh,
                             preferred_element_type=jnp.float32)
        tg = jnp.tanh(gates * gate_scale)           # single EUP pass over (Bp, 4H)
        sg = 0.5 * tg + 0.5                         # == sigmoid(gates) on i/f/o lanes
        i_g = sg[:, 0 * H:1 * H]
        f_g = sg[:, 1 * H:2 * H]
        g_g = tg[:, 2 * H:3 * H]
        o_g = sg[:, 3 * H:4 * H]
        c_new = f_g * c + i_g * g_g
        h_new = o_g * jnp.tanh(c_new)
        return h_new, c_new

    h0 = jnp.zeros((Bp, H), jnp.float32)
    c0 = jnp.zeros((Bp, H), jnp.float32)
    unroll = S if S <= 16 else 8                    # cap unroll for long sequences
    h_fin, _ = jax.lax.fori_loop(0, S, step, (h0, c0), unroll=unroll)

    # ---- final Linear(hidden, output) on rx[:, -1] ----------------------------
    out_ref[...] = (jnp.dot(h_fin, w1_ref[...],
                            preferred_element_type=jnp.float32)
                    + b1_ref[...]).astype(out_ref.dtype)


def init_params(key, input_size, hidden_size, output_size, t2v_out=16):
    """Deterministic parameter init mirroring the PyTorch module's shapes."""
    ks = jax.random.split(key, 12)
    p = {}
    # SineActivation
    p["t2v_w"] = jax.random.normal(ks[0], (input_size, t2v_out - 1), jnp.float32)
    p["t2v_b"] = jax.random.normal(ks[1], (t2v_out - 1,), jnp.float32)
    p["t2v_w0"] = jax.random.normal(ks[2], (input_size, 1), jnp.float32)
    p["t2v_b0"] = jax.random.normal(ks[3], (1,), jnp.float32)
    # layer0: Linear(16, input_size) — torch weight layout (out, in)
    p["l0_w"] = jax.random.normal(ks[4], (input_size, t2v_out), jnp.float32) * 0.2
    p["l0_b"] = jax.random.normal(ks[5], (input_size,), jnp.float32) * 0.1
    # LSTM(input_size, hidden_size), torch layout (4H, D_in) / (4H, H)
    p["w_ih"] = jax.random.normal(ks[6], (4 * hidden_size, input_size), jnp.float32) * 0.2
    p["w_hh"] = jax.random.normal(ks[7], (4 * hidden_size, hidden_size), jnp.float32) * 0.2
    p["b_ih"] = jax.random.normal(ks[8], (4 * hidden_size,), jnp.float32) * 0.1
    p["b_hh"] = jax.random.normal(ks[9], (4 * hidden_size,), jnp.float32) * 0.1
    # layer1: Linear(hidden, output)
    p["l1_w"] = jax.random.normal(ks[10], (output_size, hidden_size), jnp.float32) * 0.2
    p["l1_b"] = jax.random.normal(ks[11], (output_size,), jnp.float32) * 0.1
    return p


def fuse_params(params):
    """One-time parameter fusion (call at load time, NOT per inference).

    Folds layer0 into W_ih, merges the two Time2Vec projections, folds the
    biases, pre-transposes everything into kernel layout, and casts w_hh to
    bf16 for the MXU-native recurrent matmul.
    """
    w_ih_T = params["w_ih"].T.astype(jnp.float32)                           # (D_in, 4H)
    wt2v = jnp.concatenate([params["t2v_w"], params["t2v_w0"]],
                           axis=1).astype(jnp.float32)                      # (D_in, 16)
    bt2v = jnp.concatenate([params["t2v_b"],
                            params["t2v_b0"]]).reshape(1, -1).astype(jnp.float32)
    wfus = (params["l0_w"].T @ w_ih_T).astype(jnp.float32)                  # (16, 4H)
    bfus = (params["l0_b"] @ w_ih_T + params["b_ih"]
            + params["b_hh"]).reshape(1, -1).astype(jnp.float32)            # (1, 4H)
    whh = params["w_hh"].T.astype(jnp.bfloat16)                             # (H, 4H)
    w1 = params["l1_w"].T.astype(jnp.float32)                               # (H, out)
    b1 = params["l1_b"].reshape(1, -1).astype(jnp.float32)                  # (1, out)
    return {"wt2v": wt2v, "bt2v": bt2v, "wfus": wfus, "bfus": bfus,
            "whh": whh, "w1": w1, "b1": b1}


@jax.jit
def lstm_model_forward(x, fused):
    """Forward pass of LSTMmodel(arc_num=0, use_t2v=True, use_dual_lstm=False).

    x: (B, S, D_in) float32 (batch_first, as in the PyTorch module).
    fused: output of fuse_params() (precomputed once).
    Returns: (B, output_size).
    """
    if x.ndim < 3:
        x = x[:, None, :]                       # mirrors torch unsqueeze(1)
    B, S, D_in = x.shape
    H = fused["whh"].shape[0]
    out_size = fused["b1"].shape[1]

    # pad batch to the f32 sublane count (8) so every vreg is fully occupied;
    # single scatter into a pre-transposed (S, Bp, D) buffer, then a free
    # bitcast-reshape to the time-major flat layout (row t*Bp + b == x[b, t]).
    Bp = max(8, ((B + 7) // 8) * 8)
    x_tm = (jnp.zeros((S, Bp, D_in), jnp.float32)
            .at[:, :B, :].set(jnp.swapaxes(x.astype(jnp.float32), 0, 1))
            .reshape(S * Bp, D_in))

    inputs = (x_tm, fused["wt2v"], fused["bt2v"], fused["wfus"], fused["bfus"],
              fused["whh"], fused["w1"], fused["b1"])
    vmem_spec = pl.BlockSpec(memory_space=pltpu.MemorySpace.VMEM)

    # VMEM budget: the S-scaled gx scratch + x_tm dominate; size the scoped
    # limit explicitly so long sequences don't hit the 16/32 MiB defaults.
    resident_bytes = 4 * S * Bp * (4 * H + D_in) + 4 * Bp * out_size + (64 << 10)
    vmem_limit = int(min(100 << 20, max(32 << 20, 2 * resident_bytes)))
    # TODO(synk): for very long S, chunk the gx precompute (grid over S-chunks or
    # pltpu.emit_pipeline) instead of one monolithic scratch; on v7x add a
    # ("parallel",) batch-chunk grid axis once the serving batch gives Bp >= 16.

    out = pl.pallas_call(
        _lstm_kernel,
        out_shape=jax.ShapeDtypeStruct((Bp, out_size), jnp.float32),
        in_specs=[vmem_spec] * len(inputs),
        out_specs=vmem_spec,
        scratch_shapes=[pltpu.VMEM((S * Bp, 4 * H), jnp.float32)],
        compiler_params=pltpu.CompilerParams(vmem_limit_bytes=vmem_limit),
    )(*inputs)
    return out[:B]


def _reference_forward(x, params):
    """Pure-JAX f32 reference matching the PyTorch module (correctness check)."""
    if x.ndim < 3:
        x = x[:, None, :]
    v1 = jnp.sin(x @ params["t2v_w"] + params["t2v_b"])
    v2 = x @ params["t2v_w0"] + params["t2v_b0"]
    x16 = jnp.concatenate([v1, v2], axis=-1)
    x0 = x16 @ params["l0_w"].T + params["l0_b"]
    B, S, _ = x0.shape
    H = params["w_hh"].shape[1]
    w_ih_T, w_hh_T = params["w_ih"].T, params["w_hh"].T
    b = params["b_ih"] + params["b_hh"]
    h = jnp.zeros((B, H), jnp.float32)
    c = jnp.zeros((B, H), jnp.float32)
    for t in range(S):
        g = x0[:, t] @ w_ih_T + h @ w_hh_T + b
        i = jax.nn.sigmoid(g[:, 0 * H:1 * H])
        f = jax.nn.sigmoid(g[:, 1 * H:2 * H])
        gg = jnp.tanh(g[:, 2 * H:3 * H])
        o = jax.nn.sigmoid(g[:, 3 * H:4 * H])
        c = f * c + i * gg
        h = o * jnp.tanh(c)
    return h @ params["l1_w"].T + params["l1_b"]


if __name__ == "__main__":
    # Small shapes consistent with the module's forward.
    B, S = 4, 8
    input_size, hidden_size, output_size = 8, 32, 4

    key = jax.random.PRNGKey(0)
    kx, kp = jax.random.split(key)
    x = jax.random.normal(kx, (B, S, input_size), jnp.float32)
    params = init_params(kp, input_size, hidden_size, output_size)

    fused = fuse_params(params)          # one-time fusion, outside the hot path
    jax.block_until_ready(fused)

    out = lstm_model_forward(x, fused)
    jax.block_until_ready(out)
    assert out.shape == (B, output_size)

    ref = _reference_forward(x, params)
    # bf16 recurrent-matmul operands (f32 accumulation) compound over S steps,
    # so parity vs the pure-f32 reference uses a looser tolerance.
    assert jnp.allclose(out, ref, atol=5e-2, rtol=5e-2), "kernel/reference mismatch"
    print("KERNEL_OK")
</pallas_src>

<mosaic_0001>
module attributes {stable_mosaic.version = 11 : i64} {
  func.func @_lstm_kernel(%arg0: memref<64x8xf32, #tpu.memory_space<vmem>>, %arg1: memref<8x16xf32, #tpu.memory_space<vmem>>, %arg2: memref<1x16xf32, #tpu.memory_space<vmem>>, %arg3: memref<16x128xf32, #tpu.memory_space<vmem>>, %arg4: memref<1x128xf32, #tpu.memory_space<vmem>>, %arg5: memref<32x128xbf16, #tpu.memory_space<vmem>>, %arg6: memref<32x4xf32, #tpu.memory_space<vmem>>, %arg7: memref<1x4xf32, #tpu.memory_space<vmem>>, %arg8: memref<8x4xf32, #tpu.memory_space<vmem>>, %arg9: memref<64x128xf32, #tpu.memory_space<vmem>>) attributes {dimension_semantics = [], scalar_prefetch = 0 : i64, scratch_operands = 1 : i64, tpu.core_type = #tpu.core_type<tc>} {
    %c0 = arith.constant 0 : index
    %c0_0 = arith.constant 0 : index
    %0 = vector.load %arg0[%c0, %c0_0] : memref<64x8xf32, #tpu.memory_space<vmem>>, vector<64x8xf32>
    %c0_1 = arith.constant 0 : index
    %c0_2 = arith.constant 0 : index
    %1 = vector.load %arg1[%c0_1, %c0_2] : memref<8x16xf32, #tpu.memory_space<vmem>>, vector<8x16xf32>
    %cst = arith.constant dense<0.000000e+00> : vector<64x16xf32>
    %2 = tpu.matmul %0, %1, %cst {dimension_numbers = #tpu.dot_dimension_numbers<[1], [0], [0], [1], [0, 0, 1, 1], [], []>} : vector<64x8xf32>, vector<8x16xf32>, vector<64x16xf32> -> vector<64x16xf32>
    %c0_3 = arith.constant 0 : index
    %c0_4 = arith.constant 0 : index
    %3 = vector.load %arg2[%c0_3, %c0_4] : memref<1x16xf32, #tpu.memory_space<vmem>>, vector<1x16xf32>
    %4 = vector.broadcast %3 : vector<1x16xf32> to vector<64x16xf32>
    %5 = arith.addf %2, %4 : vector<64x16xf32>
    %6 = tpu.iota {dimensions = array<i32: 1>} : vector<64x16xi32>
    %c15_i32 = arith.constant 15 : i32
    %7 = vector.broadcast %c15_i32 : i32 to vector<64x16xi32>
    %8 = arith.cmpi slt, %6, %7 : vector<64x16xi32>
    %9 = math.sin %5 : vector<64x16xf32>
    %10 = arith.select %8, %9, %5 : vector<64x16xi1>, vector<64x16xf32>
    %c0_5 = arith.constant 0 : index
    %c0_6 = arith.constant 0 : index
    %11 = vector.load %arg3[%c0_5, %c0_6] : memref<16x128xf32, #tpu.memory_space<vmem>>, vector<16x128xf32>
    %cst_7 = arith.constant dense<0.000000e+00> : vector<64x128xf32>
    %12 = tpu.matmul %10, %11, %cst_7 {dimension_numbers = #tpu.dot_dimension_numbers<[1], [0], [0], [1], [0, 0, 1, 1], [], []>} : vector<64x16xf32>, vector<16x128xf32>, vector<64x128xf32> -> vector<64x128xf32>
    %c0_8 = arith.constant 0 : index
    %c0_9 = arith.constant 0 : index
    %13 = vector.load %arg4[%c0_8, %c0_9] : memref<1x128xf32, #tpu.memory_space<vmem>>, vector<1x128xf32>
    %14 = vector.broadcast %13 : vector<1x128xf32> to vector<64x128xf32>
    %15 = arith.addf %12, %14 : vector<64x128xf32>
    %c0_10 = arith.constant 0 : index
    %c0_11 = arith.constant 0 : index
    %16 = vector.load %arg9[%c0_10, %c0_11] : memref<64x128xf32, #tpu.memory_space<vmem>>, vector<64x128xf32>
    tpu.vector_store %arg9[%c0_10, %c0_11], %15 {strides = array<i32>} : memref<64x128xf32, #tpu.memory_space<vmem>>, vector<64x128xf32>,
    %c0_12 = arith.constant 0 : index
    %c0_13 = arith.constant 0 : index
    %17 = vector.load %arg5[%c0_12, %c0_13] : memref<32x128xbf16, #tpu.memory_space<vmem>>, vector<32x128xbf16>
    %18 = tpu.iota {dimensions = array<i32: 1>} : vector<1x128xi32>
    %c64_i32 = arith.constant 64 : i32
    %19 = vector.broadcast %c64_i32 : i32 to vector<1x128xi32>
    %20 = arith.cmpi sge, %18, %19 : vector<1x128xi32>
    %c96_i32 = arith.constant 96 : i32
    %21 = vector.broadcast %c96_i32 : i32 to vector<1x128xi32>
    %22 = arith.cmpi slt, %18, %21 : vector<1x128xi32>
    %23 = arith.andi %20, %22 : vector<1x128xi1>
    %cst_14 = arith.constant 1.000000e+00 : f32
    %cst_15 = arith.constant 5.000000e-01 : f32
    %24 = vector.broadcast %cst_14 : f32 to vector<1x128xf32>
    %25 = vector.broadcast %cst_15 : f32 to vector<1x128xf32>
    %26 = arith.select %23, %24, %25 : vector<1x128xi1>, vector<1x128xf32>
    %cst_16 = arith.constant 0.000000e+00 : f32
    %27 = vector.broadcast %cst_16 : f32 to vector<8x32xf32>
    %cst_17 = arith.constant 0.000000e+00 : f32
    %28 = vector.broadcast %cst_17 : f32 to vector<8x32xf32>
    %c0_i32 = arith.constant 0 : i32
    %c8_i32 = arith.constant 8 : i32
    %29 = arith.muli %c0_i32, %c8_i32 : i32
    %30 = tpu.assume_multiple %29, 8 : i32
    %31 = arith.index_cast %30 : i32 to index
    %c0_18 = arith.constant 0 : index
    %32 = vector.load %arg9[%31, %c0_18] : memref<64x128xf32, #tpu.memory_space<vmem>>, vector<8x128xf32>
    %33 = arith.truncf %27 : vector<8x32xf32> to vector<8x32xbf16>
    %cst_19 = arith.constant dense<0.000000e+00> : vector<8x128xf32>
    %34 = tpu.matmul %33, %17, %cst_19 {dimension_numbers = #tpu.dot_dimension_numbers<[1], [0], [0], [1], [0, 0, 1, 1], [], []>} : vector<8x32xbf16>, vector<32x128xbf16>, vector<8x128xf32> -> vector<8x128xf32>
    %35 = arith.addf %32, %34 : vector<8x128xf32>
    %36 = vector.broadcast %26 : vector<1x128xf32> to vector<8x128xf32>
    %37 = arith.mulf %35, %36 : vector<8x128xf32>
    %38 = math.tanh %37 : vector<8x128xf32>
    %cst_20 = arith.constant 5.000000e-01 : f32
    %39 = vector.broadcast %cst_20 : f32 to vector<8x128xf32>
    %40 = arith.mulf %39, %38 : vector<8x128xf32>
    %cst_21 = arith.constant 5.000000e-01 : f32
    %41 = vector.broadcast %cst_21 : f32 to vector<8x128xf32>
    %42 = arith.addf %40, %41 : vector<8x128xf32>
    %43 = vector.extract_strided_slice %42 {offsets = [0, 0], sizes = [8, 32], strides = [1, 1]} : vector<8x128xf32> to vector<8x32xf32>
    %44 = vector.extract_strided_slice %42 {offsets = [0, 32], sizes = [8, 32], strides = [1, 1]} : vector<8x128xf32> to vector<8x32xf32>
    %45 = vector.extract_strided_slice %38 {offsets = [0, 64], sizes = [8, 32], strides = [1, 1]} : vector<8x128xf32> to vector<8x32xf32>
    %46 = vector.extract_strided_slice %42 {offsets = [0, 96], sizes = [8, 32], strides = [1, 1]} : vector<8x128xf32> to vector<8x32xf32>
    %47 = arith.mulf %44, %28 : vector<8x32xf32>
    %48 = arith.mulf %43, %45 : vector<8x32xf32>
    %49 = arith.addf %47, %48 : vector<8x32xf32>
    %50 = math.tanh %49 : vector<8x32xf32>
    %51 = arith.mulf %46, %50 : vector<8x32xf32>
    %c1_i32 = arith.constant 1 : i32
    %c8_i32_22 = arith.constant 8 : i32
    %52 = arith.muli %c1_i32, %c8_i32_22 : i32
    %53 = tpu.assume_multiple %52, 8 : i32
    %54 = arith.index_cast %53 : i32 to index
    %c0_23 = arith.constant 0 : index
    %55 = vector.load %arg9[%54, %c0_23] : memref<64x128xf32, #tpu.memory_space<vmem>>, vector<8x128xf32>
    %56 = arith.truncf %51 : vector<8x32xf32> to vector<8x32xbf16>
    %cst_24 = arith.constant dense<0.000000e+00> : vector<8x128xf32>
    %57 = tpu.matmul %56, %17, %cst_24 {dimension_numbers = #tpu.dot_dimension_numbers<[1], [0], [0], [1], [0, 0, 1, 1], [], []>} : vector<8x32xbf16>, vector<32x128xbf16>, vector<8x128xf32> -> vector<8x128xf32>
    %58 = arith.addf %55, %57 : vector<8x128xf32>
    %59 = vector.broadcast %26 : vector<1x128xf32> to vector<8x128xf32>
    %60 = arith.mulf %58, %59 : vector<8x128xf32>
    %61 = math.tanh %60 : vector<8x128xf32>
    %cst_25 = arith.constant 5.000000e-01 : f32
    %62 = vector.broadcast %cst_25 : f32 to vector<8x128xf32>
    %63 = arith.mulf %62, %61 : vector<8x128xf32>
    %cst_26 = arith.constant 5.000000e-01 : f32
    %64 = vector.broadcast %cst_26 : f32 to vector<8x128xf32>
    %65 = arith.addf %63, %64 : vector<8x128xf32>
    %66 = vector.extract_strided_slice %65 {offsets = [0, 0], sizes = [8, 32], strides = [1, 1]} : vector<8x128xf32> to vector<8x32xf32>
    %67 = vector.extract_strided_slice %65 {offsets = [0, 32], sizes = [8, 32], strides = [1, 1]} : vector<8x128xf32> to vector<8x32xf32>
    %68 = vector.extract_strided_slice %61 {offsets = [0, 64], sizes = [8, 32], strides = [1, 1]} : vector<8x128xf32> to vector<8x32xf32>
    %69 = vector.extract_strided_slice %65 {offsets = [0, 96], sizes = [8, 32], strides = [1, 1]} : vector<8x128xf32> to vector<8x32xf32>
    %70 = arith.mulf %67, %49 : vector<8x32xf32>
    %71 = arith.mulf %66, %68 : vector<8x32xf32>
    %72 = arith.addf %70, %71 : vector<8x32xf32>
    %73 = math.tanh %72 : vector<8x32xf32>
    %74 = arith.mulf %69, %73 : vector<8x32xf32>
    %c2_i32 = arith.constant 2 : i32
    %c8_i32_27 = arith.constant 8 : i32
    %75 = arith.muli %c2_i32, %c8_i32_27 : i32
    %76 = tpu.assume_multiple %75, 8 : i32
    %77 = arith.index_cast %76 : i32 to index
    %c0_28 = arith.constant 0 : index
    %78 = vector.load %arg9[%77, %c0_28] : memref<64x128xf32, #tpu.memory_space<vmem>>, vector<8x128xf32>
    %79 = arith.truncf %74 : vector<8x32xf32> to vector<8x32xbf16>
    %cst_29 = arith.constant dense<0.000000e+00> : vector<8x128xf32>
    %80 = tpu.matmul %79, %17, %cst_29 {dimension_numbers = #tpu.dot_dimension_numbers<[1], [0], [0], [1], [0, 0, 1, 1], [], []>} : vector<8x32xbf16>, vector<32x128xbf16>, vector<8x128xf32> -> vector<8x128xf32>
    %81 = arith.addf %78, %80 : vector<8x128xf32>
    %82 = vector.broadcast %26 : vector<1x128xf32> to vector<8x128xf32>
    %83 = arith.mulf %81, %82 : vector<8x128xf32>
    %84 = math.tanh %83 : vector<8x128xf32>
    %cst_30 = arith.constant 5.000000e-01 : f32
    %85 = vector.broadcast %cst_30 : f32 to vector<8x128xf32>
    %86 = arith.mulf %85, %84 : vector<8x128xf32>
    %cst_31 = arith.constant 5.000000e-01 : f32
    %87 = vector.broadcast %cst_31 : f32 to vector<8x128xf32>
    %88 = arith.addf %86, %87 : vector<8x128xf32>
    %89 = vector.extract_strided_slice %88 {offsets = [0, 0], sizes = [8, 32], strides = [1, 1]} : vector<8x128xf32> to vector<8x32xf32>
    %90 = vector.extract_strided_slice %88 {offsets = [0, 32], sizes = [8, 32], strides = [1, 1]} : vector<8x128xf32> to vector<8x32xf32>
    %91 = vector.extract_strided_slice %84 {offsets = [0, 64], sizes = [8, 32], strides = [1, 1]} : vector<8x128xf32> to vector<8x32xf32>
    %92 = vector.extract_strided_slice %88 {offsets = [0, 96], sizes = [8, 32], strides = [1, 1]} : vector<8x128xf32> to vector<8x32xf32>
    %93 = arith.mulf %90, %72 : vector<8x32xf32>
    %94 = arith.mulf %89, %91 : vector<8x32xf32>
    %95 = arith.addf %93, %94 : vector<8x32xf32>
    %96 = math.tanh %95 : vector<8x32xf32>
    %97 = arith.mulf %92, %96 : vector<8x32xf32>
    %c3_i32 = arith.constant 3 : i32
    %c8_i32_32 = arith.constant 8 : i32
    %98 = arith.muli %c3_i32, %c8_i32_32 : i32
    %99 = tpu.assume_multiple %98, 8 : i32
    %100 = arith.index_cast %99 : i32 to index
    %c0_33 = arith.constant 0 : index
    %101 = vector.load %arg9[%100, %c0_33] : memref<64x128xf32, #tpu.memory_space<vmem>>, vector<8x128xf32>
    %102 = arith.truncf %97 : vector<8x32xf32> to vector<8x32xbf16>
    %cst_34 = arith.constant dense<0.000000e+00> : vector<8x128xf32>
    %103 = tpu.matmul %102, %17, %cst_34 {dimension_numbers = #tpu.dot_dimension_numbers<[1], [0], [0], [1], [0, 0, 1, 1], [], []>} : vector<8x32xbf16>, vector<32x128xbf16>, vector<8x128xf32> -> vector<8x128xf32>
    %104 = arith.addf %101, %103 : vector<8x128xf32>
    %105 = vector.broadcast %26 : vector<1x128xf32> to vector<8x128xf32>
    %106 = arith.mulf %104, %105 : vector<8x128xf32>
    %107 = math.tanh %106 : vector<8x128xf32>
    %cst_35 = arith.constant 5.000000e-01 : f32
    %108 = vector.broadcast %cst_35 : f32 to vector<8x128xf32>
    %109 = arith.mulf %108, %107 : vector<8x128xf32>
    %cst_36 = arith.constant 5.000000e-01 : f32
    %110 = vector.broadcast %cst_36 : f32 to vector<8x128xf32>
    %111 = arith.addf %109, %110 : vector<8x128xf32>
    %112 = vector.extract_strided_slice %111 {offsets = [0, 0], sizes = [8, 32], strides = [1, 1]} : vector<8x128xf32> to vector<8x32xf32>
    %113 = vector.extract_strided_slice %111 {offsets = [0, 32], sizes = [8, 32], strides = [1, 1]} : vector<8x128xf32> to vector<8x32xf32>
    %114 = vector.extract_strided_slice %107 {offsets = [0, 64], sizes = [8, 32], strides = [1, 1]} : vector<8x128xf32> to vector<8x32xf32>
    %115 = vector.extract_strided_slice %111 {offsets = [0, 96], sizes = [8, 32], strides = [1, 1]} : vector<8x128xf32> to vector<8x32xf32>
    %116 = arith.mulf %113, %95 : vector<8x32xf32>
    %117 = arith.mulf %112, %114 : vector<8x32xf32>
    %118 = arith.addf %116, %117 : vector<8x32xf32>
    %119 = math.tanh %118 : vector<8x32xf32>
    %120 = arith.mulf %115, %119 : vector<8x32xf32>
    %c4_i32 = arith.constant 4 : i32
    %c8_i32_37 = arith.constant 8 : i32
    %121 = arith.muli %c4_i32, %c8_i32_37 : i32
    %122 = tpu.assume_multiple %121, 8 : i32
    %123 = arith.index_cast %122 : i32 to index
    %c0_38 = arith.constant 0 : index
    %124 = vector.load %arg9[%123, %c0_38] : memref<64x128xf32, #tpu.memory_space<vmem>>, vector<8x128xf32>
    %125 = arith.truncf %120 : vector<8x32xf32> to vector<8x32xbf16>
    %cst_39 = arith.constant dense<0.000000e+00> : vector<8x128xf32>
    %126 = tpu.matmul %125, %17, %cst_39 {dimension_numbers = #tpu.dot_dimension_numbers<[1], [0], [0], [1], [0, 0, 1, 1], [], []>} : vector<8x32xbf16>, vector<32x128xbf16>, vector<8x128xf32> -> vector<8x128xf32>
    %127 = arith.addf %124, %126 : vector<8x128xf32>
    %128 = vector.broadcast %26 : vector<1x128xf32> to vector<8x128xf32>
    %129 = arith.mulf %127, %128 : vector<8x128xf32>
    %130 = math.tanh %129 : vector<8x128xf32>
    %cst_40 = arith.constant 5.000000e-01 : f32
    %131 = vector.broadcast %cst_40 : f32 to vector<8x128xf32>
    %132 = arith.mulf %131, %130 : vector<8x128xf32>
    %cst_41 = arith.constant 5.000000e-01 : f32
    %133 = vector.broadcast %cst_41 : f32 to vector<8x128xf32>
    %134 = arith.addf %132, %133 : vector<8x128xf32>
    %135 = vector.extract_strided_slice %134 {offsets = [0, 0], sizes = [8, 32], strides = [1, 1]} : vector<8x128xf32> to vector<8x32xf32>
    %136 = vector.extract_strided_slice %134 {offsets = [0, 32], sizes = [8, 32], strides = [1, 1]} : vector<8x128xf32> to vector<8x32xf32>
    %137 = vector.extract_strided_slice %130 {offsets = [0, 64], sizes = [8, 32], strides = [1, 1]} : vector<8x128xf32> to vector<8x32xf32>
    %138 = vector.extract_strided_slice %134 {offsets = [0, 96], sizes = [8, 32], strides = [1, 1]} : vector<8x128xf32> to vector<8x32xf32>
    %139 = arith.mulf %136, %118 : vector<8x32xf32>
    %140 = arith.mulf %135, %137 : vector<8x32xf32>
    %141 = arith.addf %139, %140 : vector<8x32xf32>
    %142 = math.tanh %141 : vector<8x32xf32>
    %143 = arith.mulf %138, %142 : vector<8x32xf32>
    %c5_i32 = arith.constant 5 : i32
    %c8_i32_42 = arith.constant 8 : i32
    %144 = arith.muli %c5_i32, %c8_i32_42 : i32
    %145 = tpu.assume_multiple %144, 8 : i32
    %146 = arith.index_cast %145 : i32 to index
    %c0_43 = arith.constant 0 : index
    %147 = vector.load %arg9[%146, %c0_43] : memref<64x128xf32, #tpu.memory_space<vmem>>, vector<8x128xf32>
    %148 = arith.truncf %143 : vector<8x32xf32> to vector<8x32xbf16>
    %cst_44 = arith.constant dense<0.000000e+00> : vector<8x128xf32>
    %149 = tpu.matmul %148, %17, %cst_44 {dimension_numbers = #tpu.dot_dimension_numbers<[1], [0], [0], [1], [0, 0, 1, 1], [], []>} : vector<8x32xbf16>, vector<32x128xbf16>, vector<8x128xf32> -> vector<8x128xf32>
    %150 = arith.addf %147, %149 : vector<8x128xf32>
    %151 = vector.broadcast %26 : vector<1x128xf32> to vector<8x128xf32>
    %152 = arith.mulf %150, %151 : vector<8x128xf32>
    %153 = math.tanh %152 : vector<8x128xf32>
    %cst_45 = arith.constant 5.000000e-01 : f32
    %154 = vector.broadcast %cst_45 : f32 to vector<8x128xf32>
    %155 = arith.mulf %154, %153 : vector<8x128xf32>
    %cst_46 = arith.constant 5.000000e-01 : f32
    %156 = vector.broadcast %cst_46 : f32 to vector<8x128xf32>
    %157 = arith.addf %155, %156 : vector<8x128xf32>
    %158 = vector.extract_strided_slice %157 {offsets = [0, 0], sizes = [8, 32], strides = [1, 1]} : vector<8x128xf32> to vector<8x32xf32>
    %159 = vector.extract_strided_slice %157 {offsets = [0, 32], sizes = [8, 32], strides = [1, 1]} : vector<8x128xf32> to vector<8x32xf32>
    %160 = vector.extract_strided_slice %153 {offsets = [0, 64], sizes = [8, 32], strides = [1, 1]} : vector<8x128xf32> to vector<8x32xf32>
    %161 = vector.extract_strided_slice %157 {offsets = [0, 96], sizes = [8, 32], strides = [1, 1]} : vector<8x128xf32> to vector<8x32xf32>
    %162 = arith.mulf %159, %141 : vector<8x32xf32>
    %163 = arith.mulf %158, %160 : vector<8x32xf32>
    %164 = arith.addf %162, %163 : vector<8x32xf32>
    %165 = math.tanh %164 : vector<8x32xf32>
    %166 = arith.mulf %161, %165 : vector<8x32xf32>
    %c6_i32 = arith.constant 6 : i32
    %c8_i32_47 = arith.constant 8 : i32
    %167 = arith.muli %c6_i32, %c8_i32_47 : i32
    %168 = tpu.assume_multiple %167, 8 : i32
    %169 = arith.index_cast %168 : i32 to index
    %c0_48 = arith.constant 0 : index
    %170 = vector.load %arg9[%169, %c0_48] : memref<64x128xf32, #tpu.memory_space<vmem>>, vector<8x128xf32>
    %171 = arith.truncf %166 : vector<8x32xf32> to vector<8x32xbf16>
    %cst_49 = arith.constant dense<0.000000e+00> : vector<8x128xf32>
    %172 = tpu.matmul %171, %17, %cst_49 {dimension_numbers = #tpu.dot_dimension_numbers<[1], [0], [0], [1], [0, 0, 1, 1], [], []>} : vector<8x32xbf16>, vector<32x128xbf16>, vector<8x128xf32> -> vector<8x128xf32>
    %173 = arith.addf %170, %172 : vector<8x128xf32>
    %174 = vector.broadcast %26 : vector<1x128xf32> to vector<8x128xf32>
    %175 = arith.mulf %173, %174 : vector<8x128xf32>
    %176 = math.tanh %175 : vector<8x128xf32>
    %cst_50 = arith.constant 5.000000e-01 : f32
    %177 = vector.broadcast %cst_50 : f32 to vector<8x128xf32>
    %178 = arith.mulf %177, %176 : vector<8x128xf32>
    %cst_51 = arith.constant 5.000000e-01 : f32
    %179 = vector.broadcast %cst_51 : f32 to vector<8x128xf32>
    %180 = arith.addf %178, %179 : vector<8x128xf32>
    %181 = vector.extract_strided_slice %180 {offsets = [0, 0], sizes = [8, 32], strides = [1, 1]} : vector<8x128xf32> to vector<8x32xf32>
    %182 = vector.extract_strided_slice %180 {offsets = [0, 32], sizes = [8, 32], strides = [1, 1]} : vector<8x128xf32> to vector<8x32xf32>
    %183 = vector.extract_strided_slice %176 {offsets = [0, 64], sizes = [8, 32], strides = [1, 1]} : vector<8x128xf32> to vector<8x32xf32>
    %184 = vector.extract_strided_slice %180 {offsets = [0, 96], sizes = [8, 32], strides = [1, 1]} : vector<8x128xf32> to vector<8x32xf32>
    %185 = arith.mulf %182, %164 : vector<8x32xf32>
    %186 = arith.mulf %181, %183 : vector<8x32xf32>
    %187 = arith.addf %185, %186 : vector<8x32xf32>
    %188 = math.tanh %187 : vector<8x32xf32>
    %189 = arith.mulf %184, %188 : vector<8x32xf32>
    %c7_i32 = arith.constant 7 : i32
    %c8_i32_52 = arith.constant 8 : i32
    %190 = arith.muli %c7_i32, %c8_i32_52 : i32
    %191 = tpu.assume_multiple %190, 8 : i32
    %192 = arith.index_cast %191 : i32 to index
    %c0_53 = arith.constant 0 : index
    %193 = vector.load %arg9[%192, %c0_53] : memref<64x128xf32, #tpu.memory_space<vmem>>, vector<8x128xf32>
    %194 = arith.truncf %189 : vector<8x32xf32> to vector<8x32xbf16>
    %cst_54 = arith.constant dense<0.000000e+00> : vector<8x128xf32>
    %195 = tpu.matmul %194, %17, %cst_54 {dimension_numbers = #tpu.dot_dimension_numbers<[1], [0], [0], [1], [0, 0, 1, 1], [], []>} : vector<8x32xbf16>, vector<32x128xbf16>, vector<8x128xf32> -> vector<8x128xf32>
    %196 = arith.addf %193, %195 : vector<8x128xf32>
    %197 = vector.broadcast %26 : vector<1x128xf32> to vector<8x128xf32>
    %198 = arith.mulf %196, %197 : vector<8x128xf32>
    %199 = math.tanh %198 : vector<8x128xf32>
    %cst_55 = arith.constant 5.000000e-01 : f32
    %200 = vector.broadcast %cst_55 : f32 to vector<8x128xf32>
    %201 = arith.mulf %200, %199 : vector<8x128xf32>
    %cst_56 = arith.constant 5.000000e-01 : f32
    %202 = vector.broadcast %cst_56 : f32 to vector<8x128xf32>
    %203 = arith.addf %201, %202 : vector<8x128xf32>
    %204 = vector.extract_strided_slice %203 {offsets = [0, 0], sizes = [8, 32], strides = [1, 1]} : vector<8x128xf32> to vector<8x32xf32>
    %205 = vector.extract_strided_slice %203 {offsets = [0, 32], sizes = [8, 32], strides = [1, 1]} : vector<8x128xf32> to vector<8x32xf32>
    %206 = vector.extract_strided_slice %199 {offsets = [0, 64], sizes = [8, 32], strides = [1, 1]} : vector<8x128xf32> to vector<8x32xf32>
    %207 = vector.extract_strided_slice %203 {offsets = [0, 96], sizes = [8, 32], strides = [1, 1]} : vector<8x128xf32> to vector<8x32xf32>
    %208 = arith.mulf %205, %187 : vector<8x32xf32>
    %209 = arith.mulf %204, %206 : vector<8x32xf32>
    %210 = arith.addf %208, %209 : vector<8x32xf32>
    %211 = math.tanh %210 : vector<8x32xf32>
    %212 = arith.mulf %207, %211 : vector<8x32xf32>
    %c8_i32_57 = arith.constant 8 : i32
    %c0_58 = arith.constant 0 : index
    %c0_59 = arith.constant 0 : index
    %213 = vector.load %arg6[%c0_58, %c0_59] : memref<32x4xf32, #tpu.memory_space<vmem>>, vector<32x4xf32>
    %cst_60 = arith.constant dense<0.000000e+00> : vector<8x4xf32>
    %214 = tpu.matmul %212, %213, %cst_60 {dimension_numbers = #tpu.dot_dimension_numbers<[1], [0], [0], [1], [0, 0, 1, 1], [], []>} : vector<8x32xf32>, vector<32x4xf32>, vector<8x4xf32> -> vector<8x4xf32>
    %c0_61 = arith.constant 0 : index
    %c0_62 = arith.constant 0 : index
    %215 = vector.load %arg7[%c0_61, %c0_62] : memref<1x4xf32, #tpu.memory_space<vmem>>, vector<1x4xf32>
    %216 = vector.broadcast %215 : vector<1x4xf32> to vector<8x4xf32>
    %217 = arith.addf %214, %216 : vector<8x4xf32>
    %c0_63 = arith.constant 0 : index
    %c0_64 = arith.constant 0 : index
    %218 = vector.load %arg8[%c0_63, %c0_64] : memref<8x4xf32, #tpu.memory_space<vmem>>, vector<8x4xf32>
    tpu.vector_store %arg8[%c0_63, %c0_64], %217 {strides = array<i32>} : memref<8x4xf32, #tpu.memory_space<vmem>>, vector<8x4xf32>,
    return
  }
}

</mosaic_0001>

<llo_original>
// kernel: lstm_model_forward.1
$region0: #{lstm_model_forward.1}
  #allocation0 [shape = 'u32[]', space=smem, size = 0x4, offset = 0x4, fixed_abs, tag = 'smem constant byte address 0x4 - core index']
  #allocation1 [shape = 'u32[144,128]{1,0:T(1,128)}', space=vmem, size = 0x12000, scoped, tag = 'internal scratch']
  #allocation2 [shape = 'f32[64,128]{1,0:T(8,128)}', space=vmem, size = 0x8000, scoped, tag = 'scratch operand']
  %s0 = inlined_call_operand.vmem [shape: f32[64,8], index: 0, kind: input, shape index: {}]
  %s1 = inlined_call_operand.vmem [shape: f32[8,16], index: 1, kind: input, shape index: {}]
  %s2 = inlined_call_operand.vmem [shape: f32[1,16], index: 2, kind: input, shape index: {}]
  %s3 = inlined_call_operand.vmem [shape: f32[16,128], index: 3, kind: input, shape index: {}]
  %s4 = inlined_call_operand.vmem [shape: f32[1,128], index: 4, kind: input, shape index: {}]
  %s5 = inlined_call_operand.vmem [shape: bf16[32,128], index: 5, kind: input, shape index: {}]
  %s6 = inlined_call_operand.vmem [shape: f32[32,4], index: 6, kind: input, shape index: {}]
  %s7 = inlined_call_operand.vmem [shape: f32[1,4], index: 7, kind: input, shape index: {}]
  %s8 = inlined_call_operand.vmem [shape: f32[8,4], index: 8, kind: output, shape index: {}]
  %s9 = sld [smem:[#allocation0]]
  $region42: #{lstm_model_forward.1} parent=0
    _
  %s11 = ssub.s32 1, %s9
  %s12 = scalar_select 0, %s11, %s9
  // Predicated region
  $region2: #{lstm_model_forward.1} parent=0 // pred_check
    _
  $region3: #{lstm_model_forward.1} parent=0 // pred_check_branch
    %14 = sbr.rel (0) target = $region5
  $region4: #{lstm_model_forward.1} parent=0 // pred_region
    _
  $region5: #{lstm_model_forward.1} parent=0 // pred_fallthru
    _
  // Predicated region
  $region6: #{lstm_model_forward.1} parent=0 // pred_check
    _
  $region7: #{lstm_model_forward.1} parent=0 // pred_check_branch
    %16 = sbr.rel (0) target = $region9
  $region8: #{lstm_model_forward.1} parent=0 // pred_region
    _
  $region9: #{lstm_model_forward.1} parent=0 // pred_fallthru
    _
  // Predicated region
  $region10: #{lstm_model_forward.1} parent=0 // pred_check
    _
  $region11: #{lstm_model_forward.1} parent=0 // pred_check_branch
    %18 = sbr.rel (0) target = $region13
  $region12: #{lstm_model_forward.1} parent=0 // pred_region
    _
  $region13: #{lstm_model_forward.1} parent=0 // pred_fallthru
    _
  // Predicated region
  $region14: #{lstm_model_forward.1} parent=0 // pred_check
    _
  $region15: #{lstm_model_forward.1} parent=0 // pred_check_branch
    %20 = sbr.rel (0) target = $region17
  $region16: #{lstm_model_forward.1} parent=0 // pred_region
    _
  $region17: #{lstm_model_forward.1} parent=0 // pred_fallthru
    _
  // Predicated region
  $region18: #{lstm_model_forward.1} parent=0 // pred_check
    _
  $region19: #{lstm_model_forward.1} parent=0 // pred_check_branch
    %22 = sbr.rel (0) target = $region21
  $region20: #{lstm_model_forward.1} parent=0 // pred_region
    _
  $region21: #{lstm_model_forward.1} parent=0 // pred_fallthru
    _
  // Predicated region
  $region22: #{lstm_model_forward.1} parent=0 // pred_check
    _
  $region23: #{lstm_model_forward.1} parent=0 // pred_check_branch
    %24 = sbr.rel (0) target = $region25
  $region24: #{lstm_model_forward.1} parent=0 // pred_region
    _
  $region25: #{lstm_model_forward.1} parent=0 // pred_fallthru
    _
  // Predicated region
  $region26: #{lstm_model_forward.1} parent=0 // pred_check
    _
  $region27: #{lstm_model_forward.1} parent=0 // pred_check_branch
    %26 = sbr.rel (0) target = $region29
  $region28: #{lstm_model_forward.1} parent=0 // pred_region
    _
  $region29: #{lstm_model_forward.1} parent=0 // pred_fallthru
    _
  // Predicated region
  $region30: #{lstm_model_forward.1} parent=0 // pred_check
    _
  $region31: #{lstm_model_forward.1} parent=0 // pred_check_branch
    %28 = sbr.rel (0) target = $region33
  $region32: #{lstm_model_forward.1} parent=0 // pred_region
    _
  $region33: #{lstm_model_forward.1} parent=0 // pred_fallthru
    _
  %v30 = vld [vmem:[%s0] sm:$0xff]
  %v31 = vld [vmem:[%s0 + $0x8] sm:$0xff]
  %v32 = vld [vmem:[%s0 + $0x10] sm:$0xff]
  %v33 = vld [vmem:[%s0 + $0x18] sm:$0xff]
  %v34 = vld [vmem:[%s0 + $0x20] sm:$0xff]
  %v35 = vld [vmem:[%s0 + $0x28] sm:$0xff]
  %v36 = vld [vmem:[%s0 + $0x30] sm:$0xff]
  %v37 = vld [vmem:[%s0 + $0x38] sm:$0xff]
  %v38 = vld [vmem:[%s1] sm:$0xff]
  %v39 = vld [vmem:[%s2] sm:$0x1]
  %v41 = vlaneseq
  %v42 = vshrl.u32 %v41, 7
  %v43 = vsub.s32 0, %v42
  %v44 = vrot.slane %v39, %v43
  %vm46 = vcmask 64512
  %v48 = vsel %vm46, %v30, 0
  %v51 = vsel %vm46, %v31, 0
  %v54 = vsel %vm46, %v32, 0
  %v57 = vsel %vm46, %v33, 0
  %v60 = vsel %vm46, %v34, 0
  %v63 = vsel %vm46, %v35, 0
  %v66 = vsel %vm46, %v36, 0
  %v69 = vsel %vm46, %v37, 0
  %71 = vmatprep.subr.mxu0 0.0
  %72 = vmatpush1.msra.mxu0 %v38
  %73 = vmatprep.subr.mxu0 0.0
  %74 = vmatpush1.msra.mxu0 0.0
  %75 = vmatprep.subr.mxu0 0.0
  %76 = vmatpush1.msra.mxu0 0.0
  %77 = vmatprep.subr.mxu0 0.0
  %78 = vmatpush1.msra.mxu0 0.0
  %79 = vmatprep.subr.mxu0 0.0
  %80 = vmatpush1.msra.mxu0 0.0
  %81 = vmatprep.subr.mxu0 0.0
  %82 = vmatpush1.msra.mxu0 0.0
  %83 = vmatprep.subr.mxu0 0.0
  %84 = vmatpush1.msra.mxu0 0.0
  %85 = vmatprep.subr.mxu0 0.0
  %86 = vmatpush1.msra.mxu0 0.0
  %87 = vmatprep.subr.mxu0 0.0
  %88 = vmatpush1.msra.mxu0 0.0
  %89 = vmatprep.subr.mxu0 0.0
  %90 = vmatpush1.msra.mxu0 0.0
  %91 = vmatprep.subr.mxu0 0.0
  %92 = vmatpush1.msra.mxu0 0.0
  %93 = vmatprep.subr.mxu0 0.0
  %94 = vmatpush1.msra.mxu0 0.0
  %95 = vmatprep.subr.mxu0 0.0
  %96 = vmatpush1.msra.mxu0 0.0
  %97 = vmatprep.subr.mxu0 0.0
  %98 = vmatpush1.msra.mxu0 0.0
  %99 = vmatprep.subr.mxu0 0.0
  %100 = vmatpush1.msra.mxu0 0.0
  %101 = vmatprep.subr.mxu0 0.0
  %102 = vmatpush1.msra.mxu0 0.0
  %103 = vmatprep.subr.mxu0 0.0
  %104 = vmatpush1.msra.mxu0 0.0
  %105 = vmatprep.subr.mxu0 0.0
  %106 = vmatpush1.msra.mxu0 0.0
  %107 = vmatprep.subr.mxu0 0.0
  %108 = vmatpush1.msra.mxu0 0.0
  %109 = vmatprep.subr.mxu0 0.0
  %110 = vmatpush1.msra.mxu0 0.0
  %111 = vmatprep.subr.mxu0 0.0
  %112 = vmatpush1.msra.mxu0 0.0
  %113 = vmatprep.subr.mxu0 0.0
  %114 = vmatpush1.msra.mxu0 0.0
  %115 = vmatprep.subr.mxu0 0.0
  %116 = vmatpush1.msra.mxu0 0.0
  %117 = vmatprep.subr.mxu0 0.0
  %118 = vmatpush1.msra.mxu0 0.0
  %119 = vmatprep.subr.mxu0 0.0
  %120 = vmatpush1.msra.mxu0 0.0
  %121 = vmatprep.subr.mxu0 0.0
  %122 = vmatpush1.msra.mxu0 0.0
  %123 = vmatprep.subr.mxu0 0.0
  %124 = vmatpush1.msra.mxu0 0.0
  %125 = vmatprep.subr.mxu0 0.0
  %126 = vmatpush1.msra.mxu0 0.0
  %127 = vmatprep.subr.mxu0 0.0
  %128 = vmatpush1.msra.mxu0 0.0
  %129 = vmatprep.subr.mxu0 0.0
  %130 = vmatpush1.msra.mxu0 0.0
  %131 = vmatprep.subr.mxu0 0.0
  %132 = vmatpush1.msra.mxu0 0.0
  %133 = vmatprep.subr.mxu0 0.0
  %134 = vmatpush1.msra.mxu0 0.0
  %135 = vmatprep.mubr.f32.mxu0 0.0
  %136 = vmatmul.mubr.f32.gmra.mrb[0].mxu0 %v48
  %v137 = vpop.f32.mrb[0].mxu0
  %v138 = vadd.f32 %v44, %v137
  %v139 = vpop.f32.mrb[0].mxu0
  %140 = vmatprep.mubr.f32.mxu0 0.0
  %141 = vmatmul.mubr.f32.gmra.mrb[0].mxu0 %v51
  %v142 = vpop.f32.mrb[0].mxu0
  %v143 = vadd.f32 %v44, %v142
  %v144 = vpop.f32.mrb[0].mxu0
  %145 = vmatprep.mubr.f32.mxu0 0.0
  %146 = vmatmul.mubr.f32.gmra.mrb[0].mxu0 %v54
  %v147 = vpop.f32.mrb[0].mxu0
  %v148 = vadd.f32 %v44, %v147
  %v149 = vpop.f32.mrb[0].mxu0
  %150 = vmatprep.mubr.f32.mxu0 0.0
  %151 = vmatmul.mubr.f32.gmra.mrb[0].mxu0 %v57
  %v152 = vpop.f32.mrb[0].mxu0
  %v153 = vadd.f32 %v44, %v152
  %v154 = vpop.f32.mrb[0].mxu0
  %155 = vmatprep.mubr.f32.mxu0 0.0
  %156 = vmatmul.mubr.f32.gmra.mrb[0].mxu0 %v60
  %v157 = vpop.f32.mrb[0].mxu0
  %v158 = vadd.f32 %v44, %v157
  %v159 = vpop.f32.mrb[0].mxu0
  %160 = vmatprep.mubr.f32.mxu0 0.0
  %161 = vmatmul.mubr.f32.gmra.mrb[0].mxu0 %v63
  %v162 = vpop.f32.mrb[0].mxu0
  %v163 = vadd.f32 %v44, %v162
  %v164 = vpop.f32.mrb[0].mxu0
  %165 = vmatprep.mubr.f32.mxu0 0.0
  %166 = vmatmul.mubr.f32.gmra.mrb[0].mxu0 %v66
  %v167 = vpop.f32.mrb[0].mxu0
  %v168 = vadd.f32 %v44, %v167
  %v169 = vpop.f32.mrb[0].mxu0
  %170 = vmatprep.mubr.f32.mxu0 0.0
  %171 = vmatmul.mubr.f32.gmra.mrb[0].mxu0 %v69
  %v172 = vpop.f32.mrb[0].mxu0
  %v173 = vadd.f32 %v44, %v172
  %v174 = vpop.f32.mrb[0].mxu0
  %175 = vdwg.mxu0
  %v176 = vlaneseq
  %v177 = vand.u32 %v176, 127
  %vm178 = vcmp.lt.s32.totalorder %v177, 15
  %v179 = vand.u32 2147483647, %v138
  %vm180 = vcmp.le.f32.partialorder %v179, 0.7853982
  %vm181 = vcmp.lt.s32.totalorder %v138, 0
  %v182 = vand.u32 %v138, 2139095040
  %v183 = vshrl.u32 %v182, 23
  %v184 = vsub.s32 %v183, 127
  %v185 = vand.u32 2147483647, %v138
  %v186 = vand.u32 %v185, 8388607
  %v187 = vor.u32 %v186, 8388608
  %v188 = vsub.s32 0, %v187
  %v189 = vadd.s32 %v184, 1
  %vm190 = vcmp.gt.s32.totalorder %v189, 0
  %v191 = vsel %vm190, %v189, 0
  %v192 = vshrl.u32 %v191, 5
  %v193 = vand.u32 %v191, 31
  %v194 = vsub.s32 32, %v193
  %v195 = vshrl.u32 683565275, %v194
  %v196 = vshll.u32 683565275, %v193
  %v197 = vshrl.u32 2475754826, %v194
  %v198 = vor.u32 %v196, %v197
  %v199 = vshll.u32 2475754826, %v193
  %v200 = vshrl.u32 2131351028, %v194
  %v201 = vor.u32 %v199, %v200
  %v202 = vshll.u32 2131351028, %v193
  %v203 = vshrl.u32 2102212464, %v194
  %v204 = vor.u32 %v202, %v203
  %v205 = vshll.u32 2102212464, %v193
  %v206 = vshrl.u32 920167782, %v194
  %v207 = vor.u32 %v205, %v206
  %v208 = vshll.u32 920167782, %v193
  %v209 = vshrl.u32 1326507024, %v194
  %v210 = vor.u32 %v208, %v209
  %vm211 = vcmp.lt.s32.totalorder %v192, 1
  %vm212 = vcmp.lt.s32.totalorder %v192, 2
  %vm213 = vcmp.lt.s32.totalorder %v192, 3
  %vm214 = vcmp.lt.s32.totalorder %v192, 4
  %v215 = vsel %vm211, %v195, %v198
  %v216 = vsel %vm214, %v204, 2102212464
  %v217 = vsel %vm213, %v201, %v216
  %v218 = vsel %vm212, %v215, %v217
  %v219 = vsel %vm211, %v198, %v201
  %v220 = vsel %vm214, %v207, 920167782
  %v221 = vsel %vm213, %v204, %v220
  %v222 = vsel %vm212, %v219, %v221
  %v223 = vsel %vm211, %v201, %v204
  %v224 = vsel %vm214, %v210, 1326507024
  %v225 = vsel %vm213, %v207, %v224
  %v226 = vsel %vm212, %v223, %v225
  %v227 = vshll.u32 %v187, 8
  %v228 = vmul.u32.u64.compose %v227, %v226
  %v229 = vextract.low.u32 %v228
  %v230 = vextract.high.u32 %v228
  %v231 = vmul.u32.u64.compose %v227, %v222
  %v232 = vextract.low.u32 %v231
  %v233 = vextract.high.u32 %v231
  %v234 = vmul.u32 %v227, %v218
  %v235 = vadd.s32 %v230, %v232
  %vm236 = vc.u32 %v230, %v232
  %v237 = vadd.s32 %v233, 1
  %v238 = vsel %vm236, %v237, %v233
  %v239 = vadd.s32 %v234, %v238
  %v240 = vadd.s32 %v239, 536870912
  %v241 = vshrl.u32 %v240, 30
  %v242 = vshll.u32 %v241, 30
  %v243 = vsub.s32 %v239, %v242
  %vm244 = vcmp.lt.s32.totalorder %v243, 0
  %v245 = vsub.s32 0, %v243
  %v246 = vsel %vm244, %v245, %v243
  %v247 = vclz %v246
  %v248 = vsub.s32 %v247, 2
  %vm249 = vcmp.gt.s32.totalorder 0, %v248
  %v250 = vsel %vm249, 0, %v248
  %v251 = vsub.s32 32, %v250
  %v252 = vshll.u32 %v243, %v250
  %v253 = vshrl.u32 %v235, %v251
  %v254 = vor.u32 %v252, %v253
  %v255 = vsub.s32 4294967266, %v250
  %v256 = vadd.s32 %v255, 127
  %v257 = vshll.u32 %v256, 23
  %v258 = vor.u32 4788187, %v257
  %v259 = vand.u32 2147483647, %v258
  %v261 = vcvt.s32.f32 %v254
  %v262 = vmul.f32 %v261, %v259
  %v263 = vxor.u32 %v262, 2147483648
  %v264 = vsel %vm181, %v263, %v262
  %v265 = vsub.s32 4, %v241
  %v266 = vsel %vm181, %v265, %v241
  %v267 = vsel %vm180, %v138, %v264
  %v268 = vsel %vm180, 0, %v266
  %v269 = vcosq.f32.pop %v267
  %v270 = vsinq.f32.pop %v267
  %vm271 = vweird.f32 %v138
  %v272 = vadd.s32 %v268, 3
  %v273 = vand.u32 %v272, 3
  %vm274 = vcmp.lt.s32.totalorder %v273, 2
  %vm275 = vcmp.eq.s32.totalorder %v273, 0
  %v276 = vxor.u32 %v270, 2147483648
  %v277 = vsel %vm275, %v269, %v276
  %vm278 = vcmp.eq.s32.totalorder %v273, 2
  %v279 = vxor.u32 %v269, 2147483648
  %v280 = vsel %vm278, %v279, %v270
  %v281 = vsel %vm274, %v277, %v280
  %v282 = vsel %vm271, nan, %v281
  %v283 = vand.u32 2147483647, %v143
  %vm284 = vcmp.le.f32.partialorder %v283, 0.7853982
  %vm285 = vcmp.lt.s32.totalorder %v143, 0
  %v286 = vand.u32 %v143, 2139095040
  %v287 = vshrl.u32 %v286, 23
  %v288 = vsub.s32 %v287, 127
  %v289 = vand.u32 2147483647, %v143
  %v290 = vand.u32 %v289, 8388607
  %v291 = vor.u32 %v290, 8388608
  %v292 = vsub.s32 0, %v291
  %v293 = vadd.s32 %v288, 1
  %vm294 = vcmp.gt.s32.totalorder %v293, 0
  %v295 = vsel %vm294, %v293, 0
  %v296 = vshrl.u32 %v295, 5
  %v297 = vand.u32 %v295, 31
  %v298 = vsub.s32 32, %v297
  %v299 = vshrl.u32 683565275, %v298
  %v300 = vshll.u32 683565275, %v297
  %v301 = vshrl.u32 2475754826, %v298
  %v302 = vor.u32 %v300, %v301
  %v303 = vshll.u32 2475754826, %v297
  %v304 = vshrl.u32 2131351028, %v298
  %v305 = vor.u32 %v303, %v304
  %v306 = vshll.u32 2131351028, %v297
  %v307 = vshrl.u32 2102212464, %v298
  %v308 = vor.u32 %v306, %v307
  %v309 = vshll.u32 2102212464, %v297
  %v310 = vshrl.u32 920167782, %v298
  %v311 = vor.u32 %v309, %v310
  %v312 = vshll.u32 920167782, %v297
  %v313 = vshrl.u32 1326507024, %v298
  %v314 = vor.u32 %v312, %v313
  %vm315 = vcmp.lt.s32.totalorder %v296, 1
  %vm316 = vcmp.lt.s32.totalorder %v296, 2
  %vm317 = vcmp.lt.s32.totalorder %v296, 3
  %vm318 = vcmp.lt.s32.totalorder %v296, 4
  %v319 = vsel %vm315, %v299, %v302
  %v320 = vsel %vm318, %v308, 2102212464
  %v321 = vsel %vm317, %v305, %v320
  %v322 = vsel %vm316, %v319, %v321
  %v323 = vsel %vm315, %v302, %v305
  %v324 = vsel %vm318, %v311, 920167782
  %v325 = vsel %vm317, %v308, %v324
  %v326 = vsel %vm316, %v323, %v325
  %v327 = vsel %vm315, %v305, %v308
  %v328 = vsel %vm318, %v314, 1326507024
  %v329 = vsel %vm317, %v311, %v328
  %v330 = vsel %vm316, %v327, %v329
  %v331 = vshll.u32 %v291, 8
  %v332 = vmul.u32.u64.compose %v331, %v330
  %v333 = vextract.low.u32 %v332
  %v334 = vextract.high.u32 %v332
  %v335 = vmul.u32.u64.compose %v331, %v326
  %v336 = vextract.low.u32 %v335
  %v337 = vextract.high.u32 %v335
  %v338 = vmul.u32 %v331, %v322
  %v339 = vadd.s32 %v334, %v336
  %vm340 = vc.u32 %v334, %v336
  %v341 = vadd.s32 %v337, 1
  %v342 = vsel %vm340, %v341, %v337
  %v343 = vadd.s32 %v338, %v342
  %v344 = vadd.s32 %v343, 536870912
  %v345 = vshrl.u32 %v344, 30
  %v346 = vshll.u32 %v345, 30
  %v347 = vsub.s32 %v343, %v346
  %vm348 = vcmp.lt.s32.totalorder %v347, 0
  %v349 = vsub.s32 0, %v347
  %v350 = vsel %vm348, %v349, %v347
  %v351 = vclz %v350
  %v352 = vsub.s32 %v351, 2
  %vm353 = vcmp.gt.s32.totalorder 0, %v352
  %v354 = vsel %vm353, 0, %v352
  %v355 = vsub.s32 32, %v354
  %v356 = vshll.u32 %v347, %v354
  %v357 = vshrl.u32 %v339, %v355
  %v358 = vor.u32 %v356, %v357
  %v359 = vsub.s32 4294967266, %v354
  %v360 = vadd.s32 %v359, 127
  %v361 = vshll.u32 %v360, 23
  %v362 = vor.u32 4788187, %v361
  %v363 = vand.u32 2147483647, %v362
  %v365 = vcvt.s32.f32 %v358
  %v366 = vmul.f32 %v365, %v363
  %v367 = vxor.u32 %v366, 2147483648
  %v368 = vsel %vm285, %v367, %v366
  %v369 = vsub.s32 4, %v345
  %v370 = vsel %vm285, %v369, %v345
  %v371 = vsel %vm284, %v143, %v368
  %v372 = vsel %vm284, 0, %v370
  %v373 = vcosq.f32.pop %v371
  %v374 = vsinq.f32.pop %v371
  %vm375 = vweird.f32 %v143
  %v376 = vadd.s32 %v372, 3
  %v377 = vand.u32 %v376, 3
  %vm378 = vcmp.lt.s32.totalorder %v377, 2
  %vm379 = vcmp.eq.s32.totalorder %v377, 0
  %v380 = vxor.u32 %v374, 2147483648
  %v381 = vsel %vm379, %v373, %v380
  %vm382 = vcmp.eq.s32.totalorder %v377, 2
  %v383 = vxor.u32 %v373, 2147483648
  %v384 = vsel %vm382, %v383, %v374
  %v385 = vsel %vm378, %v381, %v384
  %v386 = vsel %vm375, nan, %v385
  %v387 = vand.u32 2147483647, %v148
  %vm388 = vcmp.le.f32.partialorder %v387, 0.7853982
  %vm389 = vcmp.lt.s32.totalorder %v148, 0
  %v390 = vand.u32 %v148, 2139095040
  %v391 = vshrl.u32 %v390, 23
  %v392 = vsub.s32 %v391, 127
  %v393 = vand.u32 2147483647, %v148
  %v394 = vand.u32 %v393, 8388607
  %v395 = vor.u32 %v394, 8388608
  %v396 = vsub.s32 0, %v395
  %v397 = vadd.s32 %v392, 1
  %vm398 = vcmp.gt.s32.totalorder %v397, 0
  %v399 = vsel %vm398, %v397, 0
  %v400 = vshrl.u32 %v399, 5
  %v401 = vand.u32 %v399, 31
  %v402 = vsub.s32 32, %v401
  %v403 = vshrl.u32 683565275, %v402
  %v404 = vshll.u32 683565275, %v401
  %v405 = vshrl.u32 2475754826, %v402
  %v406 = vor.u32 %v404, %v405
  %v407 = vshll.u32 2475754826, %v401
  %v408 = vshrl.u32 2131351028, %v402
  %v409 = vor.u32 %v407, %v408
  %v410 = vshll.u32 2131351028, %v401
  %v411 = vshrl.u32 2102212464, %v402
  %v412 = vor.u32 %v410, %v411
  %v413 = vshll.u32 2102212464, %v401
  %v414 = vshrl.u32 920167782, %v402
  %v415 = vor.u32 %v413, %v414
  %v416 = vshll.u32 920167782, %v401
  %v417 = vshrl.u32 1326507024, %v402
  %v418 = vor.u32 %v416, %v417
  %vm419 = vcmp.lt.s32.totalorder %v400, 1
  %vm420 = vcmp.lt.s32.totalorder %v400, 2
  %vm421 = vcmp.lt.s32.totalorder %v400, 3
  %vm422 = vcmp.lt.s32.totalorder %v400, 4
  %v423 = vsel %vm419, %v403, %v406
  %v424 = vsel %vm422, %v412, 2102212464
  %v425 = vsel %vm421, %v409, %v424
  %v426 = vsel %vm420, %v423, %v425
  %v427 = vsel %vm419, %v406, %v409
  %v428 = vsel %vm422, %v415, 920167782
  %v429 = vsel %vm421, %v412, %v428
  %v430 = vsel %vm420, %v427, %v429
  %v431 = vsel %vm419, %v409, %v412
  %v432 = vsel %vm422, %v418, 1326507024
  %v433 = vsel %vm421, %v415, %v432
  %v434 = vsel %vm420, %v431, %v433
  %v435 = vshll.u32 %v395, 8
  %v436 = vmul.u32.u64.compose %v435, %v434
  %v437 = vextract.low.u32 %v436
  %v438 = vextract.high.u32 %v436
  %v439 = vmul.u32.u64.compose %v435, %v430
  %v440 = vextract.low.u32 %v439
  %v441 = vextract.high.u32 %v439
  %v442 = vmul.u32 %v435, %v426
  %v443 = vadd.s32 %v438, %v440
  %vm444 = vc.u32 %v438, %v440
  %v445 = vadd.s32 %v441, 1
  %v446 = vsel %vm444, %v445, %v441
  %v447 = vadd.s32 %v442, %v446
  %v448 = vadd.s32 %v447, 536870912
  %v449 = vshrl.u32 %v448, 30
  %v450 = vshll.u32 %v449, 30
  %v451 = vsub.s32 %v447, %v450
  %vm452 = vcmp.lt.s32.totalorder %v451, 0
  %v453 = vsub.s32 0, %v451
  %v454 = vsel %vm452, %v453, %v451
  %v455 = vclz %v454
  %v456 = vsub.s32 %v455, 2
  %vm457 = vcmp.gt.s32.totalorder 0, %v456
  %v458 = vsel %vm457, 0, %v456
  %v459 = vsub.s32 32, %v458
  %v460 = vshll.u32 %v451, %v458
  %v461 = vshrl.u32 %v443, %v459
  %v462 = vor.u32 %v460, %v461
  %v463 = vsub.s32 4294967266, %v458
  %v464 = vadd.s32 %v463, 127
  %v465 = vshll.u32 %v464, 23
  %v466 = vor.u32 4788187, %v465
  %v467 = vand.u32 2147483647, %v466
  %v469 = vcvt.s32.f32 %v462
  %v470 = vmul.f32 %v469, %v467
  %v471 = vxor.u32 %v470, 2147483648
  %v472 = vsel %vm389, %v471, %v470
  %v473 = vsub.s32 4, %v449
  %v474 = vsel %vm389, %v473, %v449
  %v475 = vsel %vm388, %v148, %v472
  %v476 = vsel %vm388, 0, %v474
  %v477 = vcosq.f32.pop %v475
  %v478 = vsinq.f32.pop %v475
  %vm479 = vweird.f32 %v148
  %v480 = vadd.s32 %v476, 3
  %v481 = vand.u32 %v480, 3
  %vm482 = vcmp.lt.s32.totalorder %v481, 2
  %vm483 = vcmp.eq.s32.totalorder %v481, 0
  %v484 = vxor.u32 %v478, 2147483648
  %v485 = vsel %vm483, %v477, %v484
  %vm486 = vcmp.eq.s32.totalorder %v481, 2
  %v487 = vxor.u32 %v477, 2147483648
  %v488 = vsel %vm486, %v487, %v478
  %v489 = vsel %vm482, %v485, %v488
  %v490 = vsel %vm479, nan, %v489
  %v491 = vand.u32 2147483647, %v153
  %vm492 = vcmp.le.f32.partialorder %v491, 0.7853982
  %vm493 = vcmp.lt.s32.totalorder %v153, 0
  %v494 = vand.u32 %v153, 2139095040
  %v495 = vshrl.u32 %v494, 23
  %v496 = vsub.s32 %v495, 127
  %v497 = vand.u32 2147483647, %v153
  %v498 = vand.u32 %v497, 8388607
  %v499 = vor.u32 %v498, 8388608
  %v500 = vsub.s32 0, %v499
  %v501 = vadd.s32 %v496, 1
  %vm502 = vcmp.gt.s32.totalorder %v501, 0
  %v503 = vsel %vm502, %v501, 0
  %v504 = vshrl.u32 %v503, 5
  %v505 = vand.u32 %v503, 31
  %v506 = vsub.s32 32, %v505
  %v507 = vshrl.u32 683565275, %v506
  %v508 = vshll.u32 683565275, %v505
  %v509 = vshrl.u32 2475754826, %v506
  %v510 = vor.u32 %v508, %v509
  %v511 = vshll.u32 2475754826, %v505
  %v512 = vshrl.u32 2131351028, %v506
  %v513 = vor.u32 %v511, %v512
  %v514 = vshll.u32 2131351028, %v505
  %v515 = vshrl.u32 2102212464, %v506
  %v516 = vor.u32 %v514, %v515
  %v517 = vshll.u32 2102212464, %v505
  %v518 = vshrl.u32 920167782, %v506
  %v519 = vor.u32 %v517, %v518
  %v520 = vshll.u32 920167782, %v505
  %v521 = vshrl.u32 1326507024, %v506
  %v522 = vor.u32 %v520, %v521
  %vm523 = vcmp.lt.s32.totalorder %v504, 1
  %vm524 = vcmp.lt.s32.totalorder %v504, 2
  %vm525 = vcmp.lt.s32.totalorder %v504, 3
  %vm526 = vcmp.lt.s32.totalorder %v504, 4
  %v527 = vsel %vm523, %v507, %v510
  %v528 = vsel %vm526, %v516, 2102212464
  %v529 = vsel %vm525, %v513, %v528
  %v530 = vsel %vm524, %v527, %v529
  %v531 = vsel %vm523, %v510, %v513
  %v532 = vsel %vm526, %v519, 920167782
  %v533 = vsel %vm525, %v516, %v532
  %v534 = vsel %vm524, %v531, %v533
  %v535 = vsel %vm523, %v513, %v516
  %v536 = vsel %vm526, %v522, 1326507024
  %v537 = vsel %vm525, %v519, %v536
  %v538 = vsel %vm524, %v535, %v537
  %v539 = vshll.u32 %v499, 8
  %v540 = vmul.u32.u64.compose %v539, %v538
  %v541 = vextract.low.u32 %v540
  %v542 = vextract.high.u32 %v540
  %v543 = vmul.u32.u64.compose %v539, %v534
  %v544 = vextract.low.u32 %v543
  %v545 = vextract.high.u32 %v543
  %v546 = vmul.u32 %v539, %v530
  %v547 = vadd.s32 %v542, %v544
  %vm548 = vc.u32 %v542, %v544
  %v549 = vadd.s32 %v545, 1
  %v550 = vsel %vm548, %v549, %v545
  %v551 = vadd.s32 %v546, %v550
  %v552 = vadd.s32 %v551, 536870912
  %v553 = vshrl.u32 %v552, 30
  %v554 = vshll.u32 %v553, 30
  %v555 = vsub.s32 %v551, %v554
  %vm556 = vcmp.lt.s32.totalorder %v555, 0
  %v557 = vsub.s32 0, %v555
  %v558 = vsel %vm556, %v557, %v555
  %v559 = vclz %v558
  %v560 = vsub.s32 %v559, 2
  %vm561 = vcmp.gt.s32.totalorder 0, %v560
  %v562 = vsel %vm561, 0, %v560
  %v563 = vsub.s32 32, %v562
  %v564 = vshll.u32 %v555, %v562
  %v565 = vshrl.u32 %v547, %v563
  %v566 = vor.u32 %v564, %v565
  %v567 = vsub.s32 4294967266, %v562
  %v568 = vadd.s32 %v567, 127
  %v569 = vshll.u32 %v568, 23
  %v570 = vor.u32 4788187, %v569
  %v571 = vand.u32 2147483647, %v570
  %v573 = vcvt.s32.f32 %v566
  %v574 = vmul.f32 %v573, %v571
  %v575 = vxor.u32 %v574, 2147483648
  %v576 = vsel %vm493, %v575, %v574
  %v577 = vsub.s32 4, %v553
  %v578 = vsel %vm493, %v577, %v553
  %v579 = vsel %vm492, %v153, %v576
  %v580 = vsel %vm492, 0, %v578
  %v581 = vcosq.f32.pop %v579
  %v582 = vsinq.f32.pop %v579
  %vm583 = vweird.f32 %v153
  %v584 = vadd.s32 %v580, 3
  %v585 = vand.u32 %v584, 3
  %vm586 = vcmp.lt.s32.totalorder %v585, 2
  %vm587 = vcmp.eq.s32.totalorder %v585, 0
  %v588 = vxor.u32 %v582, 2147483648
  %v589 = vsel %vm587, %v581, %v588
  %vm590 = vcmp.eq.s32.totalorder %v585, 2
  %v591 = vxor.u32 %v581, 2147483648
  %v592 = vsel %vm590, %v591, %v582
  %v593 = vsel %vm586, %v589, %v592
  %v594 = vsel %vm583, nan, %v593
  %v595 = vand.u32 2147483647, %v158
  %vm596 = vcmp.le.f32.partialorder %v595, 0.7853982
  %vm597 = vcmp.lt.s32.totalorder %v158, 0
  %v598 = vand.u32 %v158, 2139095040
  %v599 = vshrl.u32 %v598, 23
  %v600 = vsub.s32 %v599, 127
  %v601 = vand.u32 2147483647, %v158
  %v602 = vand.u32 %v601, 8388607
  %v603 = vor.u32 %v602, 8388608
  %v604 = vsub.s32 0, %v603
  %v605 = vadd.s32 %v600, 1
  %vm606 = vcmp.gt.s32.totalorder %v605, 0
  %v607 = vsel %vm606, %v605, 0
  %v608 = vshrl.u32 %v607, 5
  %v609 = vand.u32 %v607, 31
  %v610 = vsub.s32 32, %v609
  %v611 = vshrl.u32 683565275, %v610
  %v612 = vshll.u32 683565275, %v609
  %v613 = vshrl.u32 2475754826, %v610
  %v614 = vor.u32 %v612, %v613
  %v615 = vshll.u32 2475754826, %v609
  %v616 = vshrl.u32 2131351028, %v610
  %v617 = vor.u32 %v615, %v616
  %v618 = vshll.u32 2131351028, %v609
  %v619 = vshrl.u32 2102212464, %v610
  %v620 = vor.u32 %v618, %v619
  %v621 = vshll.u32 2102212464, %v609
  %v622 = vshrl.u32 920167782, %v610
  %v623 = vor.u32 %v621, %v622
  %v624 = vshll.u32 920167782, %v609
  %v625 = vshrl.u32 1326507024, %v610
  %v626 = vor.u32 %v624, %v625
  %vm627 = vcmp.lt.s32.totalorder %v608, 1
  %vm628 = vcmp.lt.s32.totalorder %v608, 2
  %vm629 = vcmp.lt.s32.totalorder %v608, 3
  %vm630 = vcmp.lt.s32.totalorder %v608, 4
  %v631 = vsel %vm627, %v611, %v614
  %v632 = vsel %vm630, %v620, 2102212464
  %v633 = vsel %vm629, %v617, %v632
  %v634 = vsel %vm628, %v631, %v633
  %v635 = vsel %vm627, %v614, %v617
  %v636 = vsel %vm630, %v623, 920167782
  %v637 = vsel %vm629, %v620, %v636
  %v638 = vsel %vm628, %v635, %v637
  %v639 = vsel %vm627, %v617, %v620
  %v640 = vsel %vm630, %v626, 1326507024
  %v641 = vsel %vm629, %v623, %v640
  %v642 = vsel %vm628, %v639, %v641
  %v643 = vshll.u32 %v603, 8
  %v644 = vmul.u32.u64.compose %v643, %v642
  %v645 = vextract.low.u32 %v644
  %v646 = vextract.high.u32 %v644
  %v647 = vmul.u32.u64.compose %v643, %v638
  %v648 = vextract.low.u32 %v647
  %v649 = vextract.high.u32 %v647
  %v650 = vmul.u32 %v643, %v634
  %v651 = vadd.s32 %v646, %v648
  %vm652 = vc.u32 %v646, %v648
  %v653 = vadd.s32 %v649, 1
  %v654 = vsel %vm652, %v653, %v649
  %v655 = vadd.s32 %v650, %v654
  %v656 = vadd.s32 %v655, 536870912
  %v657 = vshrl.u32 %v656, 30
  %v658 = vshll.u32 %v657, 30
  %v659 = vsub.s32 %v655, %v658
  %vm660 = vcmp.lt.s32.totalorder %v659, 0
  %v661 = vsub.s32 0, %v659
  %v662 = vsel %vm660, %v661, %v659
  %v663 = vclz %v662
  %v664 = vsub.s32 %v663, 2
  %vm665 = vcmp.gt.s32.totalorder 0, %v664
  %v666 = vsel %vm665, 0, %v664
  %v667 = vsub.s32 32, %v666
  %v668 = vshll.u32 %v659, %v666
  %v669 = vshrl.u32 %v651, %v667
  %v670 = vor.u32 %v668, %v669
  %v671 = vsub.s32 4294967266, %v666
  %v672 = vadd.s32 %v671, 127
  %v673 = vshll.u32 %v672, 23
  %v674 = vor.u32 4788187, %v673
  %v675 = vand.u32 2147483647, %v674
  %v677 = vcvt.s32.f32 %v670
  %v678 = vmul.f32 %v677, %v675
  %v679 = vxor.u32 %v678, 2147483648
  %v680 = vsel %vm597, %v679, %v678
  %v681 = vsub.s32 4, %v657
  %v682 = vsel %vm597, %v681, %v657
  %v683 = vsel %vm596, %v158, %v680
  %v684 = vsel %vm596, 0, %v682
  %v685 = vcosq.f32.pop %v683
  %v686 = vsinq.f32.pop %v683
  %vm687 = vweird.f32 %v158
  %v688 = vadd.s32 %v684, 3
  %v689 = vand.u32 %v688, 3
  %vm690 = vcmp.lt.s32.totalorder %v689, 2
  %vm691 = vcmp.eq.s32.totalorder %v689, 0
  %v692 = vxor.u32 %v686, 2147483648
  %v693 = vsel %vm691, %v685, %v692
  %vm694 = vcmp.eq.s32.totalorder %v689, 2
  %v695 = vxor.u32 %v685, 2147483648
  %v696 = vsel %vm694, %v695, %v686
  %v697 = vsel %vm690, %v693, %v696
  %v698 = vsel %vm687, nan, %v697
  %v699 = vand.u32 2147483647, %v163
  %vm700 = vcmp.le.f32.partialorder %v699, 0.7853982
  %vm701 = vcmp.lt.s32.totalorder %v163, 0
  %v702 = vand.u32 %v163, 2139095040
  %v703 = vshrl.u32 %v702, 23
  %v704 = vsub.s32 %v703, 127
  %v705 = vand.u32 2147483647, %v163
  %v706 = vand.u32 %v705, 8388607
  %v707 = vor.u32 %v706, 8388608
  %v708 = vsub.s32 0, %v707
  %v709 = vadd.s32 %v704, 1
  %vm710 = vcmp.gt.s32.totalorder %v709, 0
  %v711 = vsel %vm710, %v709, 0
  %v712 = vshrl.u32 %v711, 5
  %v713 = vand.u32 %v711, 31
  %v714 = vsub.s32 32, %v713
  %v715 = vshrl.u32 683565275, %v714
  %v716 = vshll.u32 683565275, %v713
  %v717 = vshrl.u32 2475754826, %v714
  %v718 = vor.u32 %v716, %v717
  %v719 = vshll.u32 2475754826, %v713
  %v720 = vshrl.u32 2131351028, %v714
  %v721 = vor.u32 %v719, %v720
  %v722 = vshll.u32 2131351028, %v713
  %v723 = vshrl.u32 2102212464, %v714
  %v724 = vor.u32 %v722, %v723
  %v725 = vshll.u32 2102212464, %v713
  %v726 = vshrl.u32 920167782, %v714
  %v727 = vor.u32 %v725, %v726
  %v728 = vshll.u32 920167782, %v713
  %v729 = vshrl.u32 1326507024, %v714
  %v730 = vor.u32 %v728, %v729
  %vm731 = vcmp.lt.s32.totalorder %v712, 1
  %vm732 = vcmp.lt.s32.totalorder %v712, 2
  %vm733 = vcmp.lt.s32.totalorder %v712, 3
  %vm734 = vcmp.lt.s32.totalorder %v712, 4
  %v735 = vsel %vm731, %v715, %v718
  %v736 = vsel %vm734, %v724, 2102212464
  %v737 = vsel %vm733, %v721, %v736
  %v738 = vsel %vm732, %v735, %v737
  %v739 = vsel %vm731, %v718, %v721
  %v740 = vsel %vm734, %v727, 920167782
  %v741 = vsel %vm733, %v724, %v740
  %v742 = vsel %vm732, %v739, %v741
  %v743 = vsel %vm731, %v721, %v724
  %v744 = vsel %vm734, %v730, 1326507024
  %v745 = vsel %vm733, %v727, %v744
  %v746 = vsel %vm732, %v743, %v745
  %v747 = vshll.u32 %v707, 8
  %v748 = vmul.u32.u64.compose %v747, %v746
  %v749 = vextract.low.u32 %v748
  %v750 = vextract.high.u32 %v748
  %v751 = vmul.u32.u64.compose %v747, %v742
  %v752 = vextract.low.u32 %v751
  %v753 = vextract.high.u32 %v751
  %v754 = vmul.u32 %v747, %v738
  %v755 = vadd.s32 %v750, %v752
  %vm756 = vc.u32 %v750, %v752
  %v757 = vadd.s32 %v753, 1
  %v758 = vsel %vm756, %v757, %v753
  %v759 = vadd.s32 %v754, %v758
  %v760 = vadd.s32 %v759, 536870912
  %v761 = vshrl.u32 %v760, 30
  %v762 = vshll.u32 %v761, 30
  %v763 = vsub.s32 %v759, %v762
  %vm764 = vcmp.lt.s32.totalorder %v763, 0
  %v765 = vsub.s32 0, %v763
  %v766 = vsel %vm764, %v765, %v763
  %v767 = vclz %v766
  %v768 = vsub.s32 %v767, 2
  %vm769 = vcmp.gt.s32.totalorder 0, %v768
  %v770 = vsel %vm769, 0, %v768
  %v771 = vsub.s32 32, %v770
  %v772 = vshll.u32 %v763, %v770
  %v773 = vshrl.u32 %v755, %v771
  %v774 = vor.u32 %v772, %v773
  %v775 = vsub.s32 4294967266, %v770
  %v776 = vadd.s32 %v775, 127
  %v777 = vshll.u32 %v776, 23
  %v778 = vor.u32 4788187, %v777
  %v779 = vand.u32 2147483647, %v778
  %v781 = vcvt.s32.f32 %v774
  %v782 = vmul.f32 %v781, %v779
  %v783 = vxor.u32 %v782, 2147483648
  %v784 = vsel %vm701, %v783, %v782
  %v785 = vsub.s32 4, %v761
  %v786 = vsel %vm701, %v785, %v761
  %v787 = vsel %vm700, %v163, %v784
  %v788 = vsel %vm700, 0, %v786
  %v789 = vcosq.f32.pop %v787
  %v790 = vsinq.f32.pop %v787
  %vm791 = vweird.f32 %v163
  %v792 = vadd.s32 %v788, 3
  %v793 = vand.u32 %v792, 3
  %vm794 = vcmp.lt.s32.totalorder %v793, 2
  %vm795 = vcmp.eq.s32.totalorder %v793, 0
  %v796 = vxor.u32 %v790, 2147483648
  %v797 = vsel %vm795, %v789, %v796
  %vm798 = vcmp.eq.s32.totalorder %v793, 2
  %v799 = vxor.u32 %v789, 2147483648
  %v800 = vsel %vm798, %v799, %v790
  %v801 = vsel %vm794, %v797, %v800
  %v802 = vsel %vm791, nan, %v801
  %v803 = vand.u32 2147483647, %v168
  %vm804 = vcmp.le.f32.partialorder %v803, 0.7853982
  %vm805 = vcmp.lt.s32.totalorder %v168, 0
  %v806 = vand.u32 %v168, 2139095040
  %v807 = vshrl.u32 %v806, 23
  %v808 = vsub.s32 %v807, 127
  %v809 = vand.u32 2147483647, %v168
  %v810 = vand.u32 %v809, 8388607
  %v811 = vor.u32 %v810, 8388608
  %v812 = vsub.s32 0, %v811
  %v813 = vadd.s32 %v808, 1
  %vm814 = vcmp.gt.s32.totalorder %v813, 0
  %v815 = vsel %vm814, %v813, 0
  %v816 = vshrl.u32 %v815, 5
  %v817 = vand.u32 %v815, 31
  %v818 = vsub.s32 32, %v817
  %v819 = vshrl.u32 683565275, %v818
  %v820 = vshll.u32 683565275, %v817
  %v821 = vshrl.u32 2475754826, %v818
  %v822 = vor.u32 %v820, %v821
  %v823 = vshll.u32 2475754826, %v817
  %v824 = vshrl.u32 2131351028, %v818
  %v825 = vor.u32 %v823, %v824
  %v826 = vshll.u32 2131351028, %v817
  %v827 = vshrl.u32 2102212464, %v818
  %v828 = vor.u32 %v826, %v827
  %v829 = vshll.u32 2102212464, %v817
  %v830 = vshrl.u32 920167782, %v818
  %v831 = vor.u32 %v829, %v830
  %v832 = vshll.u32 920167782, %v817
  %v833 = vshrl.u32 1326507024, %v818
  %v834 = vor.u32 %v832, %v833
  %vm835 = vcmp.lt.s32.totalorder %v816, 1
  %vm836 = vcmp.lt.s32.totalorder %v816, 2
  %vm837 = vcmp.lt.s32.totalorder %v816, 3
  %vm838 = vcmp.lt.s32.totalorder %v816, 4
  %v839 = vsel %vm835, %v819, %v822
  %v840 = vsel %vm838, %v828, 2102212464
  %v841 = vsel %vm837, %v825, %v840
  %v842 = vsel %vm836, %v839, %v841
  %v843 = vsel %vm835, %v822, %v825
  %v844 = vsel %vm838, %v831, 920167782
  %v845 = vsel %vm837, %v828, %v844
  %v846 = vsel %vm836, %v843, %v845
  %v847 = vsel %vm835, %v825, %v828
  %v848 = vsel %vm838, %v834, 1326507024
  %v849 = vsel %vm837, %v831, %v848
  %v850 = vsel %vm836, %v847, %v849
  %v851 = vshll.u32 %v811, 8
  %v852 = vmul.u32.u64.compose %v851, %v850
  %v853 = vextract.low.u32 %v852
  %v854 = vextract.high.u32 %v852
  %v855 = vmul.u32.u64.compose %v851, %v846
  %v856 = vextract.low.u32 %v855
  %v857 = vextract.high.u32 %v855
  %v858 = vmul.u32 %v851, %v842
  %v859 = vadd.s32 %v854, %v856
  %vm860 = vc.u32 %v854, %v856
  %v861 = vadd.s32 %v857, 1
  %v862 = vsel %vm860, %v861, %v857
  %v863 = vadd.s32 %v858, %v862
  %v864 = vadd.s32 %v863, 536870912
  %v865 = vshrl.u32 %v864, 30
  %v866 = vshll.u32 %v865, 30
  %v867 = vsub.s32 %v863, %v866
  %vm868 = vcmp.lt.s32.totalorder %v867, 0
  %v869 = vsub.s32 0, %v867
  %v870 = vsel %vm868, %v869, %v867
  %v871 = vclz %v870
  %v872 = vsub.s32 %v871, 2
  %vm873 = vcmp.gt.s32.totalorder 0, %v872
  %v874 = vsel %vm873, 0, %v872
  %v875 = vsub.s32 32, %v874
  %v876 = vshll.u32 %v867, %v874
  %v877 = vshrl.u32 %v859, %v875
  %v878 = vor.u32 %v876, %v877
  %v879 = vsub.s32 4294967266, %v874
  %v880 = vadd.s32 %v879, 127
  %v881 = vshll.u32 %v880, 23
  %v882 = vor.u32 4788187, %v881
  %v883 = vand.u32 2147483647, %v882
  %v885 = vcvt.s32.f32 %v878
  %v886 = vmul.f32 %v885, %v883
  %v887 = vxor.u32 %v886, 2147483648
  %v888 = vsel %vm805, %v887, %v886
  %v889 = vsub.s32 4, %v865
  %v890 = vsel %vm805, %v889, %v865
  %v891 = vsel %vm804, %v168, %v888
  %v892 = vsel %vm804, 0, %v890
  %v893 = vcosq.f32.pop %v891
  %v894 = vsinq.f32.pop %v891
  %vm895 = vweird.f32 %v168
  %v896 = vadd.s32 %v892, 3
  %v897 = vand.u32 %v896, 3
  %vm898 = vcmp.lt.s32.totalorder %v897, 2
  %vm899 = vcmp.eq.s32.totalorder %v897, 0
  %v900 = vxor.u32 %v894, 2147483648
  %v901 = vsel %vm899, %v893, %v900
  %vm902 = vcmp.eq.s32.totalorder %v897, 2
  %v903 = vxor.u32 %v893, 2147483648
  %v904 = vsel %vm902, %v903, %v894
  %v905 = vsel %vm898, %v901, %v904
  %v906 = vsel %vm895, nan, %v905
  %v907 = vand.u32 2147483647, %v173
  %vm908 = vcmp.le.f32.partialorder %v907, 0.7853982
  %vm909 = vcmp.lt.s32.totalorder %v173, 0
  %v910 = vand.u32 %v173, 2139095040
  %v911 = vshrl.u32 %v910, 23
  %v912 = vsub.s32 %v911, 127
  %v913 = vand.u32 2147483647, %v173
  %v914 = vand.u32 %v913, 8388607
  %v915 = vor.u32 %v914, 8388608
  %v916 = vsub.s32 0, %v915
  %v917 = vadd.s32 %v912, 1
  %vm918 = vcmp.gt.s32.totalorder %v917, 0
  %v919 = vsel %vm918, %v917, 0
  %v920 = vshrl.u32 %v919, 5
  %v921 = vand.u32 %v919, 31
  %v922 = vsub.s32 32, %v921
  %v923 = vshrl.u32 683565275, %v922
  %v924 = vshll.u32 683565275, %v921
  %v925 = vshrl.u32 2475754826, %v922
  %v926 = vor.u32 %v924, %v925
  %v927 = vshll.u32 2475754826, %v921
  %v928 = vshrl.u32 2131351028, %v922
  %v929 = vor.u32 %v927, %v928
  %v930 = vshll.u32 2131351028, %v921
  %v931 = vshrl.u32 2102212464, %v922
  %v932 = vor.u32 %v930, %v931
  %v933 = vshll.u32 2102212464, %v921
  %v934 = vshrl.u32 920167782, %v922
  %v935 = vor.u32 %v933, %v934
  %v936 = vshll.u32 920167782, %v921
  %v937 = vshrl.u32 1326507024, %v922
  %v938 = vor.u32 %v936, %v937
  %vm939 = vcmp.lt.s32.totalorder %v920, 1
  %vm940 = vcmp.lt.s32.totalorder %v920, 2
  %vm941 = vcmp.lt.s32.totalorder %v920, 3
  %vm942 = vcmp.lt.s32.totalorder %v920, 4
  %v943 = vsel %vm939, %v923, %v926
  %v944 = vsel %vm942, %v932, 2102212464
  %v945 = vsel %vm941, %v929, %v944
  %v946 = vsel %vm940, %v943, %v945
  %v947 = vsel %vm939, %v926, %v929
  %v948 = vsel %vm942, %v935, 920167782
  %v949 = vsel %vm941, %v932, %v948
  %v950 = vsel %vm940, %v947, %v949
  %v951 = vsel %vm939, %v929, %v932
  %v952 = vsel %vm942, %v938, 1326507024
  %v953 = vsel %vm941, %v935, %v952
  %v954 = vsel %vm940, %v951, %v953
  %v955 = vshll.u32 %v915, 8
  %v956 = vmul.u32.u64.compose %v955, %v954
  %v957 = vextract.low.u32 %v956
  %v958 = vextract.high.u32 %v956
  %v959 = vmul.u32.u64.compose %v955, %v950
  %v960 = vextract.low.u32 %v959
  %v961 = vextract.high.u32 %v959
  %v962 = vmul.u32 %v955, %v946
  %v963 = vadd.s32 %v958, %v960
  %vm964 = vc.u32 %v958, %v960
  %v965 = vadd.s32 %v961, 1
  %v966 = vsel %vm964, %v965, %v961
  %v967 = vadd.s32 %v962, %v966
  %v968 = vadd.s32 %v967, 536870912
  %v969 = vshrl.u32 %v968, 30
  %v970 = vshll.u32 %v969, 30
  %v971 = vsub.s32 %v967, %v970
  %vm972 = vcmp.lt.s32.totalorder %v971, 0
  %v973 = vsub.s32 0, %v971
  %v974 = vsel %vm972, %v973, %v971
  %v975 = vclz %v974
  %v976 = vsub.s32 %v975, 2
  %vm977 = vcmp.gt.s32.totalorder 0, %v976
  %v978 = vsel %vm977, 0, %v976
  %v979 = vsub.s32 32, %v978
  %v980 = vshll.u32 %v971, %v978
  %v981 = vshrl.u32 %v963, %v979
  %v982 = vor.u32 %v980, %v981
  %v983 = vsub.s32 4294967266, %v978
  %v984 = vadd.s32 %v983, 127
  %v985 = vshll.u32 %v984, 23
  %v986 = vor.u32 4788187, %v985
  %v987 = vand.u32 2147483647, %v986
  %v989 = vcvt.s32.f32 %v982
  %v990 = vmul.f32 %v989, %v987
  %v991 = vxor.u32 %v990, 2147483648
  %v992 = vsel %vm909, %v991, %v990
  %v993 = vsub.s32 4, %v969
  %v994 = vsel %vm909, %v993, %v969
  %v995 = vsel %vm908, %v173, %v992
  %v996 = vsel %vm908, 0, %v994
  %v997 = vcosq.f32.pop %v995
  %v998 = vsinq.f32.pop %v995
  %vm999 = vweird.f32 %v173
  %v1000 = vadd.s32 %v996, 3
  %v1001 = vand.u32 %v1000, 3
  %vm1002 = vcmp.lt.s32.totalorder %v1001, 2
  %vm1003 = vcmp.eq.s32.totalorder %v1001, 0
  %v1004 = vxor.u32 %v998, 2147483648
  %v1005 = vsel %vm1003, %v997, %v1004
  %vm1006 = vcmp.eq.s32.totalorder %v1001, 2
  %v1007 = vxor.u32 %v997, 2147483648
  %v1008 = vsel %vm1006, %v1007, %v998
  %v1009 = vsel %vm1002, %v1005, %v1008
  %v1010 = vsel %vm999, nan, %v1009
  %v1011 = vsel %vm178, %v282, %v138
  %v1012 = vsel %vm178, %v386, %v143
  %v1013 = vsel %vm178, %v490, %v148
  %v1014 = vsel %vm178, %v594, %v153
  %v1015 = vsel %vm178, %v698, %v158
  %v1016 = vsel %vm178, %v802, %v163
  %v1017 = vsel %vm178, %v906, %v168
  %v1018 = vsel %vm178, %v1010, %v173
  %v1019 = vld [vmem:[%s3] sm:$0xff]
  %v1020 = vld [vmem:[%s3 + $0x8] sm:$0xff]
  %v1021 = vld [vmem:[%s4] sm:$0x1]
  %v1023 = vlaneseq
  %v1024 = vshrl.u32 %v1023, 7
  %v1025 = vsub.s32 0, %v1024
  %v1026 = vrot.slane %v1021, %v1025
  %vm1028 = vcmask 130048
  %v1030 = vsel %vm1028, %v1011, 0
  %v1033 = vsel %vm1028, %v1012, 0
  %v1036 = vsel %vm1028, %v1013, 0
  %v1039 = vsel %vm1028, %v1014, 0
  %v1042 = vsel %vm1028, %v1015, 0
  %v1045 = vsel %vm1028, %v1016, 0
  %v1048 = vsel %vm1028, %v1017, 0
  %v1051 = vsel %vm1028, %v1018, 0
  %1053 = vmatprep.subr.mxu0 0.0
  %1054 = vmatpush1.msra.mxu0 %v1019
  %1055 = vmatprep.subr.mxu0 0.0
  %1056 = vmatpush1.msra.mxu0 %v1020
  %1057 = vmatprep.subr.mxu0 0.0
  %1058 = vmatpush1.msra.mxu0 0.0
  %1059 = vmatprep.subr.mxu0 0.0
  %1060 = vmatpush1.msra.mxu0 0.0
  %1061 = vmatprep.subr.mxu0 0.0
  %1062 = vmatpush1.msra.mxu0 0.0
  %1063 = vmatprep.subr.mxu0 0.0
  %1064 = vmatpush1.msra.mxu0 0.0
  %1065 = vmatprep.subr.mxu0 0.0
  %1066 = vmatpush1.msra.mxu0 0.0
  %1067 = vmatprep.subr.mxu0 0.0
  %1068 = vmatpush1.msra.mxu0 0.0
  %1069 = vmatprep.subr.mxu0 0.0
  %1070 = vmatpush1.msra.mxu0 0.0
  %1071 = vmatprep.subr.mxu0 0.0
  %1072 = vmatpush1.msra.mxu0 0.0
  %1073 = vmatprep.subr.mxu0 0.0
  %1074 = vmatpush1.msra.mxu0 0.0
  %1075 = vmatprep.subr.mxu0 0.0
  %1076 = vmatpush1.msra.mxu0 0.0
  %1077 = vmatprep.subr.mxu0 0.0
  %1078 = vmatpush1.msra.mxu0 0.0
  %1079 = vmatprep.subr.mxu0 0.0
  %1080 = vmatpush1.msra.mxu0 0.0
  %1081 = vmatprep.subr.mxu0 0.0
  %1082 = vmatpush1.msra.mxu0 0.0
  %1083 = vmatprep.subr.mxu0 0.0
  %1084 = vmatpush1.msra.mxu0 0.0
  %1085 = vmatprep.subr.mxu0 0.0
  %1086 = vmatpush1.msra.mxu0 0.0
  %1087 = vmatprep.subr.mxu0 0.0
  %1088 = vmatpush1.msra.mxu0 0.0
  %1089 = vmatprep.subr.mxu0 0.0
  %1090 = vmatpush1.msra.mxu0 0.0
  %1091 = vmatprep.subr.mxu0 0.0
  %1092 = vmatpush1.msra.mxu0 0.0
  %1093 = vmatprep.subr.mxu0 0.0
  %1094 = vmatpush1.msra.mxu0 0.0
  %1095 = vmatprep.subr.mxu0 0.0
  %1096 = vmatpush1.msra.mxu0 0.0
  %1097 = vmatprep.subr.mxu0 0.0
  %1098 = vmatpush1.msra.mxu0 0.0
  %1099 = vmatprep.subr.mxu0 0.0
  %1100 = vmatpush1.msra.mxu0 0.0
  %1101 = vmatprep.subr.mxu0 0.0
  %1102 = vmatpush1.msra.mxu0 0.0
  %1103 = vmatprep.subr.mxu0 0.0
  %1104 = vmatpush1.msra.mxu0 0.0
  %1105 = vmatprep.subr.mxu0 0.0
  %1106 = vmatpush1.msra.mxu0 0.0
  %1107 = vmatprep.subr.mxu0 0.0
  %1108 = vmatpush1.msra.mxu0 0.0
  %1109 = vmatprep.subr.mxu0 0.0
  %1110 = vmatpush1.msra.mxu0 0.0
  %1111 = vmatprep.subr.mxu0 0.0
  %1112 = vmatpush1.msra.mxu0 0.0
  %1113 = vmatprep.subr.mxu0 0.0
  %1114 = vmatpush1.msra.mxu0 0.0
  %1115 = vmatprep.subr.mxu0 0.0
  %1116 = vmatpush1.msra.mxu0 0.0
  %1117 = vmatprep.mubr.f32.mxu0 0.0
  %1118 = vmatmul.mubr.f32.gmra.mrb[0].mxu0 %v1030
  %v1119 = vpop.f32.mrb[0].mxu0
  %v1120 = vadd.f32 %v1026, %v1119
  %v1121 = vpop.f32.mrb[0].mxu0
  %1122 = vmatprep.mubr.f32.mxu0 0.0
  %1123 = vmatmul.mubr.f32.gmra.mrb[0].mxu0 %v1033
  %v1124 = vpop.f32.mrb[0].mxu0
  %v1125 = vadd.f32 %v1026, %v1124
  %v1126 = vpop.f32.mrb[0].mxu0
  %1127 = vmatprep.mubr.f32.mxu0 0.0
  %1128 = vmatmul.mubr.f32.gmra.mrb[0].mxu0 %v1036
  %v1129 = vpop.f32.mrb[0].mxu0
  %v1130 = vadd.f32 %v1026, %v1129
  %v1131 = vpop.f32.mrb[0].mxu0
  %1132 = vmatprep.mubr.f32.mxu0 0.0
  %1133 = vmatmul.mubr.f32.gmra.mrb[0].mxu0 %v1039
  %v1134 = vpop.f32.mrb[0].mxu0
  %v1135 = vadd.f32 %v1026, %v1134
  %v1136 = vpop.f32.mrb[0].mxu0
  %1137 = vmatprep.mubr.f32.mxu0 0.0
  %1138 = vmatmul.mubr.f32.gmra.mrb[0].mxu0 %v1042
  %v1139 = vpop.f32.mrb[0].mxu0
  %v1140 = vadd.f32 %v1026, %v1139
  %v1141 = vpop.f32.mrb[0].mxu0
  %1142 = vmatprep.mubr.f32.mxu0 0.0
  %1143 = vmatmul.mubr.f32.gmra.mrb[0].mxu0 %v1045
  %v1144 = vpop.f32.mrb[0].mxu0
  %v1145 = vadd.f32 %v1026, %v1144
  %v1146 = vpop.f32.mrb[0].mxu0
  %1147 = vmatprep.mubr.f32.mxu0 0.0
  %1148 = vmatmul.mubr.f32.gmra.mrb[0].mxu0 %v1048
  %v1149 = vpop.f32.mrb[0].mxu0
  %v1150 = vadd.f32 %v1026, %v1149
  %v1151 = vpop.f32.mrb[0].mxu0
  %1152 = vmatprep.mubr.f32.mxu0 0.0
  %1153 = vmatmul.mubr.f32.gmra.mrb[0].mxu0 %v1051
  %v1154 = vpop.f32.mrb[0].mxu0
  %v1155 = vadd.f32 %v1026, %v1154
  %v1156 = vpop.f32.mrb[0].mxu0
  %1157 = vdwg.mxu0
  %1158 = vst [vmem:[#allocation2] sm:$0xff] %v1120
  %1159 = vst [vmem:[#allocation2 + $0x8] sm:$0xff] %v1125
  %1160 = vst [vmem:[#allocation2 + $0x10] sm:$0xff] %v1130
  %1161 = vst [vmem:[#allocation2 + $0x18] sm:$0xff] %v1135
  %1162 = vst [vmem:[#allocation2 + $0x20] sm:$0xff] %v1140
  %1163 = vst [vmem:[#allocation2 + $0x28] sm:$0xff] %v1145
  %1164 = vst [vmem:[#allocation2 + $0x30] sm:$0xff] %v1150
  %1165 = vst [vmem:[#allocation2 + $0x38] sm:$0xff] %v1155
  %v1166 = vld [vmem:[%s5] sm:$0xf]
  %v1167 = vld [vmem:[%s5 + $0x4] sm:$0xf]
  %v1168 = vld [vmem:[%s5 + $0x8] sm:$0xf]
  %v1169 = vld [vmem:[%s5 + $0xc] sm:$0xf]
  %vm1170 = vcmp.ge.s32.totalorder %v177, 64
  %vm1171 = vcmp.lt.s32.totalorder %v177, 96
  %vm1172 = vmand %vm1170, %vm1171
  %v1173 = vsel %vm1172, 1.0, 0.5
  %v1174 = vld [vmem:[#allocation2] sm:$0xff]
  %v1179 = vunpack.c.l.b16 %v1166
  %v1180 = vunpack.c.l.b16 %v1167
  %v1181 = vunpack.c.l.b16 %v1168
  %v1182 = vunpack.c.l.b16 %v1169
  %v1183 = vpack.c.b16 %v1180, %v1179
  %v1184 = vpack.c.b16 %v1182, %v1181
  %vm1187 = vcmask 261120
  %v1189 = vsel %vm1187, 0, 0
  %1191 = vmatprep.subr.bf16.mxu0 0
  %1192 = vmatpush1.bf16.msra.mxu0 %v1183
  %1193 = vmatprep.subr.bf16.mxu0 0
  %1194 = vmatpush1.bf16.msra.mxu0 %v1184
  %1195 = vmatprep.subr.bf16.mxu0 0
  %1196 = vmatpush1.bf16.msra.mxu0 0
  %1197 = vmatprep.subr.bf16.mxu0 0
  %1198 = vmatpush1.bf16.msra.mxu0 0
  %1199 = vmatprep.subr.bf16.mxu0 0
  %1200 = vmatpush1.bf16.msra.mxu0 0
  %1201 = vmatprep.subr.bf16.mxu0 0
  %1202 = vmatpush1.bf16.msra.mxu0 0
  %1203 = vmatprep.subr.bf16.mxu0 0
  %1204 = vmatpush1.bf16.msra.mxu0 0
  %1205 = vmatprep.subr.bf16.mxu0 0
  %1206 = vmatpush1.bf16.msra.mxu0 0
  %1207 = vmatprep.subr.bf16.mxu0 0
  %1208 = vmatpush1.bf16.msra.mxu0 0
  %1209 = vmatprep.subr.bf16.mxu0 0
  %1210 = vmatpush1.bf16.msra.mxu0 0
  %1211 = vmatprep.subr.bf16.mxu0 0
  %1212 = vmatpush1.bf16.msra.mxu0 0
  %1213 = vmatprep.subr.bf16.mxu0 0
  %1214 = vmatpush1.bf16.msra.mxu0 0
  %1215 = vmatprep.subr.bf16.mxu0 0
  %1216 = vmatpush1.bf16.msra.mxu0 0
  %1217 = vmatprep.subr.bf16.mxu0 0
  %1218 = vmatpush1.bf16.msra.mxu0 0
  %1219 = vmatprep.subr.bf16.mxu0 0
  %1220 = vmatpush1.bf16.msra.mxu0 0
  %1221 = vmatprep.subr.bf16.mxu0 0
  %1222 = vmatpush1.bf16.msra.mxu0 0
  %1223 = vmatprep.mubr.bf16.mxu0 0
  %1224 = vmatmul.mubr.bf16.gmra.mrb[0].mxu0 %v1189
  %v1225 = vpop.f32.mrb[0].mxu0
  %v1226 = vadd.f32 0.0, %v1225
  %v1227 = vpop.f32.mrb[0].mxu0
  %v1228 = vpop.f32.mrb[0].mxu0
  %v1229 = vpop.f32.mrb[0].mxu0
  %1230 = vdwg.mxu0
  %v1231 = vadd.f32 %v1174, %v1226
  %v1232 = vmul.f32 %v1231, %v1173
  %v1233 = vtanh.pop %v1232
  %v1234 = vmul.f32 %v1233, 0.5
  %v1235 = vadd.f32 %v1234, 0.5
  %v1236 = vmul.f32 %v1235, 0.0
  %1238 = vrot.lane.b32.xlu0 %v1233, 64
  %v1239 = vpop.permute.xlu0 %1238
  %v1241 = vmul.f32 %v1235, %v1239
  %1243 = vrot.lane.b32.xlu0 %v1241, 32
  %v1244 = vpop.permute.xlu0 %1243
  %v1246 = vadd.f32 %v1236, %v1244
  %v1247 = vtanh.pop %v1246
  %1249 = vrot.lane.b32.xlu0 %v1247, 64
  %v1250 = vpop.permute.xlu0 %1249
  %v1252 = vmul.f32 %v1235, %v1250
  %s1253 = scalar_lea.vmem [#allocation2], 8
  %v1254 = vld [vmem:[%s1253] sm:$0xff]
  %v1255 = vpack.c.bf16 %v1252, %v1252
  %1257 = vrot.lane.b32.xlu0 %v1255, 32
  %v1258 = vpop.permute.xlu0 %1257
  %v1260 = vsel %vm1187, %v1258, 0
  %1262 = vmatprep.subr.bf16.mxu0 0
  %1263 = vmatpush1.bf16.msra.mxu0 %v1183
  %1264 = vmatprep.subr.bf16.mxu0 0
  %1265 = vmatpush1.bf16.msra.mxu0 %v1184
  %1266 = vmatprep.subr.bf16.mxu0 0
  %1267 = vmatpush1.bf16.msra.mxu0 0
  %1268 = vmatprep.subr.bf16.mxu0 0
  %1269 = vmatpush1.bf16.msra.mxu0 0
  %1270 = vmatprep.subr.bf16.mxu0 0
  %1271 = vmatpush1.bf16.msra.mxu0 0
  %1272 = vmatprep.subr.bf16.mxu0 0
  %1273 = vmatpush1.bf16.msra.mxu0 0
  %1274 = vmatprep.subr.bf16.mxu0 0
  %1275 = vmatpush1.bf16.msra.mxu0 0
  %1276 = vmatprep.subr.bf16.mxu0 0
  %1277 = vmatpush1.bf16.msra.mxu0 0
  %1278 = vmatprep.subr.bf16.mxu0 0
  %1279 = vmatpush1.bf16.msra.mxu0 0
  %1280 = vmatprep.subr.bf16.mxu0 0
  %1281 = vmatpush1.bf16.msra.mxu0 0
  %1282 = vmatprep.subr.bf16.mxu0 0
  %1283 = vmatpush1.bf16.msra.mxu0 0
  %1284 = vmatprep.subr.bf16.mxu0 0
  %1285 = vmatpush1.bf16.msra.mxu0 0
  %1286 = vmatprep.subr.bf16.mxu0 0
  %1287 = vmatpush1.bf16.msra.mxu0 0
  %1288 = vmatprep.subr.bf16.mxu0 0
  %1289 = vmatpush1.bf16.msra.mxu0 0
  %1290 = vmatprep.subr.bf16.mxu0 0
  %1291 = vmatpush1.bf16.msra.mxu0 0
  %1292 = vmatprep.subr.bf16.mxu0 0
  %1293 = vmatpush1.bf16.msra.mxu0 0
  %1294 = vmatprep.mubr.bf16.mxu0 0
  %1295 = vmatmul.mubr.bf16.gmra.mrb[0].mxu0 %v1260
  %v1296 = vpop.f32.mrb[0].mxu0
  %v1297 = vadd.f32 0.0, %v1296
  %v1298 = vpop.f32.mrb[0].mxu0
  %v1299 = vpop.f32.mrb[0].mxu0
  %v1300 = vpop.f32.mrb[0].mxu0
  %1301 = vdwg.mxu0
  %v1302 = vadd.f32 %v1254, %v1297
  %v1303 = vmul.f32 %v1302, %v1173
  %v1304 = vtanh.pop %v1303
  %v1305 = vmul.f32 %v1304, 0.5
  %v1306 = vadd.f32 %v1305, 0.5
  %v1307 = vmul.f32 %v1306, %v1246
  %1309 = vrot.lane.b32.xlu0 %v1304, 64
  %v1310 = vpop.permute.xlu0 %1309
  %v1312 = vmul.f32 %v1306, %v1310
  %1314 = vrot.lane.b32.xlu0 %v1312, 32
  %v1315 = vpop.permute.xlu0 %1314
  %v1317 = vadd.f32 %v1307, %v1315
  %v1318 = vtanh.pop %v1317
  %1320 = vrot.lane.b32.xlu0 %v1318, 64
  %v1321 = vpop.permute.xlu0 %1320
  %v1323 = vmul.f32 %v1306, %v1321
  %s1324 = scalar_lea.vmem [#allocation2], 16
  %v1325 = vld [vmem:[%s1324] sm:$0xff]
  %v1326 = vpack.c.bf16 %v1323, %v1323
  %1328 = vrot.lane.b32.xlu0 %v1326, 32
  %v1329 = vpop.permute.xlu0 %1328
  %v1331 = vsel %vm1187, %v1329, 0
  %1333 = vmatprep.subr.bf16.mxu0 0
  %1334 = vmatpush1.bf16.msra.mxu0 %v1183
  %1335 = vmatprep.subr.bf16.mxu0 0
  %1336 = vmatpush1.bf16.msra.mxu0 %v1184
  %1337 = vmatprep.subr.bf16.mxu0 0
  %1338 = vmatpush1.bf16.msra.mxu0 0
  %1339 = vmatprep.subr.bf16.mxu0 0
  %1340 = vmatpush1.bf16.msra.mxu0 0
  %1341 = vmatprep.subr.bf16.mxu0 0
  %1342 = vmatpush1.bf16.msra.mxu0 0
  %1343 = vmatprep.subr.bf16.mxu0 0
  %1344 = vmatpush1.bf16.msra.mxu0 0
  %1345 = vmatprep.subr.bf16.mxu0 0
  %1346 = vmatpush1.bf16.msra.mxu0 0
  %1347 = vmatprep.subr.bf16.mxu0 0
  %1348 = vmatpush1.bf16.msra.mxu0 0
  %1349 = vmatprep.subr.bf16.mxu0 0
  %1350 = vmatpush1.bf16.msra.mxu0 0
  %1351 = vmatprep.subr.bf16.mxu0 0
  %1352 = vmatpush1.bf16.msra.mxu0 0
  %1353 = vmatprep.subr.bf16.mxu0 0
  %1354 = vmatpush1.bf16.msra.mxu0 0
  %1355 = vmatprep.subr.bf16.mxu0 0
  %1356 = vmatpush1.bf16.msra.mxu0 0
  %1357 = vmatprep.subr.bf16.mxu0 0
  %1358 = vmatpush1.bf16.msra.mxu0 0
  %1359 = vmatprep.subr.bf16.mxu0 0
  %1360 = vmatpush1.bf16.msra.mxu0 0
  %1361 = vmatprep.subr.bf16.mxu0 0
  %1362 = vmatpush1.bf16.msra.mxu0 0
  %1363 = vmatprep.subr.bf16.mxu0 0
  %1364 = vmatpush1.bf16.msra.mxu0 0
  %1365 = vmatprep.mubr.bf16.mxu0 0
  %1366 = vmatmul.mubr.bf16.gmra.mrb[0].mxu0 %v1331
  %v1367 = vpop.f32.mrb[0].mxu0
  %v1368 = vadd.f32 0.0, %v1367
  %v1369 = vpop.f32.mrb[0].mxu0
  %v1370 = vpop.f32.mrb[0].mxu0
  %v1371 = vpop.f32.mrb[0].mxu0
  %1372 = vdwg.mxu0
  %v1373 = vadd.f32 %v1325, %v1368
  %v1374 = vmul.f32 %v1373, %v1173
  %v1375 = vtanh.pop %v1374
  %v1376 = vmul.f32 %v1375, 0.5
  %v1377 = vadd.f32 %v1376, 0.5
  %v1378 = vmul.f32 %v1377, %v1317
  %1380 = vrot.lane.b32.xlu0 %v1375, 64
  %v1381 = vpop.permute.xlu0 %1380
  %v1383 = vmul.f32 %v1377, %v1381
  %1385 = vrot.lane.b32.xlu0 %v1383, 32
  %v1386 = vpop.permute.xlu0 %1385
  %v1388 = vadd.f32 %v1378, %v1386
  %v1389 = vtanh.pop %v1388
  %1391 = vrot.lane.b32.xlu0 %v1389, 64
  %v1392 = vpop.permute.xlu0 %1391
  %v1394 = vmul.f32 %v1377, %v1392
  %s1395 = scalar_lea.vmem [#allocation2], 24
  %v1396 = vld [vmem:[%s1395] sm:$0xff]
  %v1397 = vpack.c.bf16 %v1394, %v1394
  %1399 = vrot.lane.b32.xlu0 %v1397, 32
  %v1400 = vpop.permute.xlu0 %1399
  %v1402 = vsel %vm1187, %v1400, 0
  %1404 = vmatprep.subr.bf16.mxu0 0
  %1405 = vmatpush1.bf16.msra.mxu0 %v1183
  %1406 = vmatprep.subr.bf16.mxu0 0
  %1407 = vmatpush1.bf16.msra.mxu0 %v1184
  %1408 = vmatprep.subr.bf16.mxu0 0
  %1409 = vmatpush1.bf16.msra.mxu0 0
  %1410 = vmatprep.subr.bf16.mxu0 0
  %1411 = vmatpush1.bf16.msra.mxu0 0
  %1412 = vmatprep.subr.bf16.mxu0 0
  %1413 = vmatpush1.bf16.msra.mxu0 0
  %1414 = vmatprep.subr.bf16.mxu0 0
  %1415 = vmatpush1.bf16.msra.mxu0 0
  %1416 = vmatprep.subr.bf16.mxu0 0
  %1417 = vmatpush1.bf16.msra.mxu0 0
  %1418 = vmatprep.subr.bf16.mxu0 0
  %1419 = vmatpush1.bf16.msra.mxu0 0
  %1420 = vmatprep.subr.bf16.mxu0 0
  %1421 = vmatpush1.bf16.msra.mxu0 0
  %1422 = vmatprep.subr.bf16.mxu0 0
  %1423 = vmatpush1.bf16.msra.mxu0 0
  %1424 = vmatprep.subr.bf16.mxu0 0
  %1425 = vmatpush1.bf16.msra.mxu0 0
  %1426 = vmatprep.subr.bf16.mxu0 0
  %1427 = vmatpush1.bf16.msra.mxu0 0
  %1428 = vmatprep.subr.bf16.mxu0 0
  %1429 = vmatpush1.bf16.msra.mxu0 0
  %1430 = vmatprep.subr.bf16.mxu0 0
  %1431 = vmatpush1.bf16.msra.mxu0 0
  %1432 = vmatprep.subr.bf16.mxu0 0
  %1433 = vmatpush1.bf16.msra.mxu0 0
  %1434 = vmatprep.subr.bf16.mxu0 0
  %1435 = vmatpush1.bf16.msra.mxu0 0
  %1436 = vmatprep.mubr.bf16.mxu0 0
  %1437 = vmatmul.mubr.bf16.gmra.mrb[0].mxu0 %v1402
  %v1438 = vpop.f32.mrb[0].mxu0
  %v1439 = vadd.f32 0.0, %v1438
  %v1440 = vpop.f32.mrb[0].mxu0
  %v1441 = vpop.f32.mrb[0].mxu0
  %v1442 = vpop.f32.mrb[0].mxu0
  %1443 = vdwg.mxu0
  %v1444 = vadd.f32 %v1396, %v1439
  %v1445 = vmul.f32 %v1444, %v1173
  %v1446 = vtanh.pop %v1445
  %v1447 = vmul.f32 %v1446, 0.5
  %v1448 = vadd.f32 %v1447, 0.5
  %v1449 = vmul.f32 %v1448, %v1388
  %1451 = vrot.lane.b32.xlu0 %v1446, 64
  %v1452 = vpop.permute.xlu0 %1451
  %v1454 = vmul.f32 %v1448, %v1452
  %1456 = vrot.lane.b32.xlu0 %v1454, 32
  %v1457 = vpop.permute.xlu0 %1456
  %v1459 = vadd.f32 %v1449, %v1457
  %v1460 = vtanh.pop %v1459
  %1462 = vrot.lane.b32.xlu0 %v1460, 64
  %v1463 = vpop.permute.xlu0 %1462
  %v1465 = vmul.f32 %v1448, %v1463
  %s1466 = scalar_lea.vmem [#allocation2], 32
  %v1467 = vld [vmem:[%s1466] sm:$0xff]
  %v1468 = vpack.c.bf16 %v1465, %v1465
  %1470 = vrot.lane.b32.xlu0 %v1468, 32
  %v1471 = vpop.permute.xlu0 %1470
  %v1473 = vsel %vm1187, %v1471, 0
  %1475 = vmatprep.subr.bf16.mxu0 0
  %1476 = vmatpush1.bf16.msra.mxu0 %v1183
  %1477 = vmatprep.subr.bf16.mxu0 0
  %1478 = vmatpush1.bf16.msra.mxu0 %v1184
  %1479 = vmatprep.subr.bf16.mxu0 0
  %1480 = vmatpush1.bf16.msra.mxu0 0
  %1481 = vmatprep.subr.bf16.mxu0 0
  %1482 = vmatpush1.bf16.msra.mxu0 0
  %1483 = vmatprep.subr.bf16.mxu0 0
  %1484 = vmatpush1.bf16.msra.mxu0 0
  %1485 = vmatprep.subr.bf16.mxu0 0
  %1486 = vmatpush1.bf16.msra.mxu0 0
  %1487 = vmatprep.subr.bf16.mxu0 0
  %1488 = vmatpush1.bf16.msra.mxu0 0
  %1489 = vmatprep.subr.bf16.mxu0 0
  %1490 = vmatpush1.bf16.msra.mxu0 0
  %1491 = vmatprep.subr.bf16.mxu0 0
  %1492 = vmatpush1.bf16.msra.mxu0 0
  %1493 = vmatprep.subr.bf16.mxu0 0
  %1494 = vmatpush1.bf16.msra.mxu0 0
  %1495 = vmatprep.subr.bf16.mxu0 0
  %1496 = vmatpush1.bf16.msra.mxu0 0
  %1497 = vmatprep.subr.bf16.mxu0 0
  %1498 = vmatpush1.bf16.msra.mxu0 0
  %1499 = vmatprep.subr.bf16.mxu0 0
  %1500 = vmatpush1.bf16.msra.mxu0 0
  %1501 = vmatprep.subr.bf16.mxu0 0
  %1502 = vmatpush1.bf16.msra.mxu0 0
  %1503 = vmatprep.subr.bf16.mxu0 0
  %1504 = vmatpush1.bf16.msra.mxu0 0
  %1505 = vmatprep.subr.bf16.mxu0 0
  %1506 = vmatpush1.bf16.msra.mxu0 0
  %1507 = vmatprep.mubr.bf16.mxu0 0
  %1508 = vmatmul.mubr.bf16.gmra.mrb[0].mxu0 %v1473
  %v1509 = vpop.f32.mrb[0].mxu0
  %v1510 = vadd.f32 0.0, %v1509
  %v1511 = vpop.f32.mrb[0].mxu0
  %v1512 = vpop.f32.mrb[0].mxu0
  %v1513 = vpop.f32.mrb[0].mxu0
  %1514 = vdwg.mxu0
  %v1515 = vadd.f32 %v1467, %v1510
  %v1516 = vmul.f32 %v1515, %v1173
  %v1517 = vtanh.pop %v1516
  %v1518 = vmul.f32 %v1517, 0.5
  %v1519 = vadd.f32 %v1518, 0.5
  %v1520 = vmul.f32 %v1519, %v1459
  %1522 = vrot.lane.b32.xlu0 %v1517, 64
  %v1523 = vpop.permute.xlu0 %1522
  %v1525 = vmul.f32 %v1519, %v1523
  %1527 = vrot.lane.b32.xlu0 %v1525, 32
  %v1528 = vpop.permute.xlu0 %1527
  %v1530 = vadd.f32 %v1520, %v1528
  %v1531 = vtanh.pop %v1530
  %1533 = vrot.lane.b32.xlu0 %v1531, 64
  %v1534 = vpop.permute.xlu0 %1533
  %v1536 = vmul.f32 %v1519, %v1534
  %s1537 = scalar_lea.vmem [#allocation2], 40
  %v1538 = vld [vmem:[%s1537] sm:$0xff]
  %v1539 = vpack.c.bf16 %v1536, %v1536
  %1541 = vrot.lane.b32.xlu0 %v1539, 32
  %v1542 = vpop.permute.xlu0 %1541
  %v1544 = vsel %vm1187, %v1542, 0
  %1546 = vmatprep.subr.bf16.mxu0 0
  %1547 = vmatpush1.bf16.msra.mxu0 %v1183
  %1548 = vmatprep.subr.bf16.mxu0 0
  %1549 = vmatpush1.bf16.msra.mxu0 %v1184
  %1550 = vmatprep.subr.bf16.mxu0 0
  %1551 = vmatpush1.bf16.msra.mxu0 0
  %1552 = vmatprep.subr.bf16.mxu0 0
  %1553 = vmatpush1.bf16.msra.mxu0 0
  %1554 = vmatprep.subr.bf16.mxu0 0
  %1555 = vmatpush1.bf16.msra.mxu0 0
  %1556 = vmatprep.subr.bf16.mxu0 0
  %1557 = vmatpush1.bf16.msra.mxu0 0
  %1558 = vmatprep.subr.bf16.mxu0 0
  %1559 = vmatpush1.bf16.msra.mxu0 0
  %1560 = vmatprep.subr.bf16.mxu0 0
  %1561 = vmatpush1.bf16.msra.mxu0 0
  %1562 = vmatprep.subr.bf16.mxu0 0
  %1563 = vmatpush1.bf16.msra.mxu0 0
  %1564 = vmatprep.subr.bf16.mxu0 0
  %1565 = vmatpush1.bf16.msra.mxu0 0
  %1566 = vmatprep.subr.bf16.mxu0 0
  %1567 = vmatpush1.bf16.msra.mxu0 0
  %1568 = vmatprep.subr.bf16.mxu0 0
  %1569 = vmatpush1.bf16.msra.mxu0 0
  %1570 = vmatprep.subr.bf16.mxu0 0
  %1571 = vmatpush1.bf16.msra.mxu0 0
  %1572 = vmatprep.subr.bf16.mxu0 0
  %1573 = vmatpush1.bf16.msra.mxu0 0
  %1574 = vmatprep.subr.bf16.mxu0 0
  %1575 = vmatpush1.bf16.msra.mxu0 0
  %1576 = vmatprep.subr.bf16.mxu0 0
  %1577 = vmatpush1.bf16.msra.mxu0 0
  %1578 = vmatprep.mubr.bf16.mxu0 0
  %1579 = vmatmul.mubr.bf16.gmra.mrb[0].mxu0 %v1544
  %v1580 = vpop.f32.mrb[0].mxu0
  %v1581 = vadd.f32 0.0, %v1580
  %v1582 = vpop.f32.mrb[0].mxu0
  %v1583 = vpop.f32.mrb[0].mxu0
  %v1584 = vpop.f32.mrb[0].mxu0
  %1585 = vdwg.mxu0
  %v1586 = vadd.f32 %v1538, %v1581
  %v1587 = vmul.f32 %v1586, %v1173
  %v1588 = vtanh.pop %v1587
  %v1589 = vmul.f32 %v1588, 0.5
  %v1590 = vadd.f32 %v1589, 0.5
  %v1591 = vmul.f32 %v1590, %v1530
  %1593 = vrot.lane.b32.xlu0 %v1588, 64
  %v1594 = vpop.permute.xlu0 %1593
  %v1596 = vmul.f32 %v1590, %v1594
  %1598 = vrot.lane.b32.xlu0 %v1596, 32
  %v1599 = vpop.permute.xlu0 %1598
  %v1601 = vadd.f32 %v1591, %v1599
  %v1602 = vtanh.pop %v1601
  %1604 = vrot.lane.b32.xlu0 %v1602, 64
  %v1605 = vpop.permute.xlu0 %1604
  %v1607 = vmul.f32 %v1590, %v1605
  %s1608 = scalar_lea.vmem [#allocation2], 48
  %v1609 = vld [vmem:[%s1608] sm:$0xff]
  %v1610 = vpack.c.bf16 %v1607, %v1607
  %1612 = vrot.lane.b32.xlu0 %v1610, 32
  %v1613 = vpop.permute.xlu0 %1612
  %v1615 = vsel %vm1187, %v1613, 0
  %1617 = vmatprep.subr.bf16.mxu0 0
  %1618 = vmatpush1.bf16.msra.mxu0 %v1183
  %1619 = vmatprep.subr.bf16.mxu0 0
  %1620 = vmatpush1.bf16.msra.mxu0 %v1184
  %1621 = vmatprep.subr.bf16.mxu0 0
  %1622 = vmatpush1.bf16.msra.mxu0 0
  %1623 = vmatprep.subr.bf16.mxu0 0
  %1624 = vmatpush1.bf16.msra.mxu0 0
  %1625 = vmatprep.subr.bf16.mxu0 0
  %1626 = vmatpush1.bf16.msra.mxu0 0
  %1627 = vmatprep.subr.bf16.mxu0 0
  %1628 = vmatpush1.bf16.msra.mxu0 0
  %1629 = vmatprep.subr.bf16.mxu0 0
  %1630 = vmatpush1.bf16.msra.mxu0 0
  %1631 = vmatprep.subr.bf16.mxu0 0
  %1632 = vmatpush1.bf16.msra.mxu0 0
  %1633 = vmatprep.subr.bf16.mxu0 0
  %1634 = vmatpush1.bf16.msra.mxu0 0
  %1635 = vmatprep.subr.bf16.mxu0 0
  %1636 = vmatpush1.bf16.msra.mxu0 0
  %1637 = vmatprep.subr.bf16.mxu0 0
  %1638 = vmatpush1.bf16.msra.mxu0 0
  %1639 = vmatprep.subr.bf16.mxu0 0
  %1640 = vmatpush1.bf16.msra.mxu0 0
  %1641 = vmatprep.subr.bf16.mxu0 0
  %1642 = vmatpush1.bf16.msra.mxu0 0
  %1643 = vmatprep.subr.bf16.mxu0 0
  %1644 = vmatpush1.bf16.msra.mxu0 0
  %1645 = vmatprep.subr.bf16.mxu0 0
  %1646 = vmatpush1.bf16.msra.mxu0 0
  %1647 = vmatprep.subr.bf16.mxu0 0
  %1648 = vmatpush1.bf16.msra.mxu0 0
  %1649 = vmatprep.mubr.bf16.mxu0 0
  %1650 = vmatmul.mubr.bf16.gmra.mrb[0].mxu0 %v1615
  %v1651 = vpop.f32.mrb[0].mxu0
  %v1652 = vadd.f32 0.0, %v1651
  %v1653 = vpop.f32.mrb[0].mxu0
  %v1654 = vpop.f32.mrb[0].mxu0
  %v1655 = vpop.f32.mrb[0].mxu0
  %1656 = vdwg.mxu0
  %v1657 = vadd.f32 %v1609, %v1652
  %v1658 = vmul.f32 %v1657, %v1173
  %v1659 = vtanh.pop %v1658
  %v1660 = vmul.f32 %v1659, 0.5
  %v1661 = vadd.f32 %v1660, 0.5
  %v1662 = vmul.f32 %v1661, %v1601
  %1664 = vrot.lane.b32.xlu0 %v1659, 64
  %v1665 = vpop.permute.xlu0 %1664
  %v1667 = vmul.f32 %v1661, %v1665
  %1669 = vrot.lane.b32.xlu0 %v1667, 32
  %v1670 = vpop.permute.xlu0 %1669
  %v1672 = vadd.f32 %v1662, %v1670
  %v1673 = vtanh.pop %v1672
  %1675 = vrot.lane.b32.xlu0 %v1673, 64
  %v1676 = vpop.permute.xlu0 %1675
  %v1678 = vmul.f32 %v1661, %v1676
  %s1679 = scalar_lea.vmem [#allocation2], 56
  %v1680 = vld [vmem:[%s1679] sm:$0xff]
  %v1681 = vpack.c.bf16 %v1678, %v1678
  %1683 = vrot.lane.b32.xlu0 %v1681, 32
  %v1684 = vpop.permute.xlu0 %1683
  %v1686 = vsel %vm1187, %v1684, 0
  %1688 = vmatprep.subr.bf16.mxu0 0
  %1689 = vmatpush1.bf16.msra.mxu0 %v1183
  %1690 = vmatprep.subr.bf16.mxu0 0
  %1691 = vmatpush1.bf16.msra.mxu0 %v1184
  %1692 = vmatprep.subr.bf16.mxu0 0
  %1693 = vmatpush1.bf16.msra.mxu0 0
  %1694 = vmatprep.subr.bf16.mxu0 0
  %1695 = vmatpush1.bf16.msra.mxu0 0
  %1696 = vmatprep.subr.bf16.mxu0 0
  %1697 = vmatpush1.bf16.msra.mxu0 0
  %1698 = vmatprep.subr.bf16.mxu0 0
  %1699 = vmatpush1.bf16.msra.mxu0 0
  %1700 = vmatprep.subr.bf16.mxu0 0
  %1701 = vmatpush1.bf16.msra.mxu0 0
  %1702 = vmatprep.subr.bf16.mxu0 0
  %1703 = vmatpush1.bf16.msra.mxu0 0
  %1704 = vmatprep.subr.bf16.mxu0 0
  %1705 = vmatpush1.bf16.msra.mxu0 0
  %1706 = vmatprep.subr.bf16.mxu0 0
  %1707 = vmatpush1.bf16.msra.mxu0 0
  %1708 = vmatprep.subr.bf16.mxu0 0
  %1709 = vmatpush1.bf16.msra.mxu0 0
  %1710 = vmatprep.subr.bf16.mxu0 0
  %1711 = vmatpush1.bf16.msra.mxu0 0
  %1712 = vmatprep.subr.bf16.mxu0 0
  %1713 = vmatpush1.bf16.msra.mxu0 0
  %1714 = vmatprep.subr.bf16.mxu0 0
  %1715 = vmatpush1.bf16.msra.mxu0 0
  %1716 = vmatprep.subr.bf16.mxu0 0
  %1717 = vmatpush1.bf16.msra.mxu0 0
  %1718 = vmatprep.subr.bf16.mxu0 0
  %1719 = vmatpush1.bf16.msra.mxu0 0
  %1720 = vmatprep.mubr.bf16.mxu0 0
  %1721 = vmatmul.mubr.bf16.gmra.mrb[0].mxu0 %v1686
  %v1722 = vpop.f32.mrb[0].mxu0
  %v1723 = vadd.f32 0.0, %v1722
  %v1724 = vpop.f32.mrb[0].mxu0
  %v1725 = vpop.f32.mrb[0].mxu0
  %v1726 = vpop.f32.mrb[0].mxu0
  %1727 = vdwg.mxu0
  %v1728 = vadd.f32 %v1680, %v1723
  %v1729 = vmul.f32 %v1728, %v1173
  %v1730 = vtanh.pop %v1729
  %v1731 = vmul.f32 %v1730, 0.5
  %v1732 = vadd.f32 %v1731, 0.5
  %v1733 = vmul.f32 %v1732, %v1672
  %1735 = vrot.lane.b32.xlu0 %v1730, 64
  %v1736 = vpop.permute.xlu0 %1735
  %v1738 = vmul.f32 %v1732, %v1736
  %1740 = vrot.lane.b32.xlu0 %v1738, 32
  %v1741 = vpop.permute.xlu0 %1740
  %v1743 = vadd.f32 %v1733, %v1741
  %v1744 = vtanh.pop %v1743
  %1746 = vrot.lane.b32.xlu0 %v1744, 64
  %v1747 = vpop.permute.xlu0 %1746
  %v1749 = vmul.f32 %v1732, %v1747
  %v1750 = vld [vmem:[%s6] sm:$0xff]
  %v1751 = vld [vmem:[%s6 + $0x8] sm:$0xff]
  %v1752 = vld [vmem:[%s6 + $0x10] sm:$0xff]
  %v1753 = vld [vmem:[%s6 + $0x18] sm:$0xff]
  %v1754 = vld [vmem:[%s7] sm:$0x1]
  %v1756 = vlaneseq
  %v1757 = vshrl.u32 %v1756, 7
  %v1758 = vsub.s32 0, %v1757
  %v1759 = vrot.slane %v1754, %v1758
  %1762 = vrot.lane.b32.xlu0 %v1749, 32
  %v1763 = vpop.permute.xlu0 %1762
  %v1764 = vsel %vm1187, %v1763, 0
  %1766 = vmatprep.subr.mxu0 0.0
  %1767 = vmatpush1.msra.mxu0 %v1750
  %1768 = vmatprep.subr.mxu0 0.0
  %1769 = vmatpush1.msra.mxu0 %v1751
  %1770 = vmatprep.subr.mxu0 0.0
  %1771 = vmatpush1.msra.mxu0 %v1752
  %1772 = vmatprep.subr.mxu0 0.0
  %1773 = vmatpush1.msra.mxu0 %v1753
  %1774 = vmatprep.subr.mxu0 0.0
  %1775 = vmatpush1.msra.mxu0 0.0
  %1776 = vmatprep.subr.mxu0 0.0
  %1777 = vmatpush1.msra.mxu0 0.0
  %1778 = vmatprep.subr.mxu0 0.0
  %1779 = vmatpush1.msra.mxu0 0.0
  %1780 = vmatprep.subr.mxu0 0.0
  %1781 = vmatpush1.msra.mxu0 0.0
  %1782 = vmatprep.subr.mxu0 0.0
  %1783 = vmatpush1.msra.mxu0 0.0
  %1784 = vmatprep.subr.mxu0 0.0
  %1785 = vmatpush1.msra.mxu0 0.0
  %1786 = vmatprep.subr.mxu0 0.0
  %1787 = vmatpush1.msra.mxu0 0.0
  %1788 = vmatprep.subr.mxu0 0.0
  %1789 = vmatpush1.msra.mxu0 0.0
  %1790 = vmatprep.subr.mxu0 0.0
  %1791 = vmatpush1.msra.mxu0 0.0
  %1792 = vmatprep.subr.mxu0 0.0
  %1793 = vmatpush1.msra.mxu0 0.0
  %1794 = vmatprep.subr.mxu0 0.0
  %1795 = vmatpush1.msra.mxu0 0.0
  %1796 = vmatprep.subr.mxu0 0.0
  %1797 = vmatpush1.msra.mxu0 0.0
  %1798 = vmatprep.subr.mxu0 0.0
  %1799 = vmatpush1.msra.mxu0 0.0
  %1800 = vmatprep.subr.mxu0 0.0
  %1801 = vmatpush1.msra.mxu0 0.0
  %1802 = vmatprep.subr.mxu0 0.0
  %1803 = vmatpush1.msra.mxu0 0.0
  %1804 = vmatprep.subr.mxu0 0.0
  %1805 = vmatpush1.msra.mxu0 0.0
  %1806 = vmatprep.subr.mxu0 0.0
  %1807 = vmatpush1.msra.mxu0 0.0
  %1808 = vmatprep.subr.mxu0 0.0
  %1809 = vmatpush1.msra.mxu0 0.0
  %1810 = vmatprep.subr.mxu0 0.0
  %1811 = vmatpush1.msra.mxu0 0.0
  %1812 = vmatprep.subr.mxu0 0.0
  %1813 = vmatpush1.msra.mxu0 0.0
  %1814 = vmatprep.subr.mxu0 0.0
  %1815 = vmatpush1.msra.mxu0 0.0
  %1816 = vmatprep.subr.mxu0 0.0
  %1817 = vmatpush1.msra.mxu0 0.0
  %1818 = vmatprep.subr.mxu0 0.0
  %1819 = vmatpush1.msra.mxu0 0.0
  %1820 = vmatprep.subr.mxu0 0.0
  %1821 = vmatpush1.msra.mxu0 0.0
  %1822 = vmatprep.subr.mxu0 0.0
  %1823 = vmatpush1.msra.mxu0 0.0
  %1824 = vmatprep.subr.mxu0 0.0
  %1825 = vmatpush1.msra.mxu0 0.0
  %1826 = vmatprep.subr.mxu0 0.0
  %1827 = vmatpush1.msra.mxu0 0.0
  %1828 = vmatprep.subr.mxu0 0.0
  %1829 = vmatpush1.msra.mxu0 0.0
  %1830 = vmatprep.mubr.f32.mxu0 0.0
  %1831 = vmatmul.mubr.f32.gmra.mrb[0].mxu0 %v1764
  %v1832 = vpop.f32.mrb[0].mxu0
  %v1833 = vadd.f32 %v1759, %v1832
  %v1834 = vpop.f32.mrb[0].mxu0
  %1835 = vdwg.mxu0
  %vm1836 = vcmask 31744
  %1837 = vst.msk [vmem:[%s8] sm:$0xff] %vm1836, %v1833
  // Predicated region
  $region34: #{lstm_model_forward.1} parent=0 // pred_check
    _
  $region35: #{lstm_model_forward.1} parent=0 // pred_check_branch
    %1839 = sbr.rel (0) target = $region37
  $region36: #{lstm_model_forward.1} parent=0 // pred_region
    _
  $region37: #{lstm_model_forward.1} parent=0 // pred_fallthru
    _
  // Predicated region
  $region38: #{lstm_model_forward.1} parent=0 // pred_check
    _
  $region39: #{lstm_model_forward.1} parent=0 // pred_check_branch
    %1841 = sbr.rel (0) target = $region41
  $region40: #{lstm_model_forward.1} parent=0 // pred_region
    _
  $region41: #{lstm_model_forward.1} parent=0 // pred_fallthru
    _

</llo_original>
